<compile_context>
chip_gen: v6e
topology: v6e:2x2x1
jax: 0.10.0
libtpu: 0.0.40
codegen_flags: <defaults>
</compile_context>

<pallas_src>
import jax
import jax.numpy as jnp
from jax.experimental import pallas as pl
from jax.experimental.pallas import tpu as pltpu


_SMALL_BYTES = 256 * 1024              # below this, a pallas launch costs more than it saves
_DEFAULT_BLOCK_BYTES = 4 * 1024 * 1024  # per-block VMEM target (v5e/v6e)
_V7X_BLOCK_BYTES = 6 * 1024 * 1024      # fatter on v7x: per-step overhead vs 3.2 TB/s HBM
# Widest first so the slab is as lane-dense as possible and blocks are few & fat.
_COL_CANDIDATES = (32768, 16384, 8192, 4096, 2048, 1024, 512, 256, 128)


def _hardsigmoid_kernel(x_ref, o_ref):
    # hardsigmoid(x) = clip(x/6 + 0.5, 0, 1)  (matches torch.nn.functional.hardsigmoid)
    x = x_ref[...].astype(jnp.float32)
    y = jnp.clip(x * (1.0 / 6.0) + 0.5, 0.0, 1.0)
    o_ref[...] = y.astype(o_ref.dtype)


def _hardsigmoid_jnp(x: jax.Array) -> jax.Array:
    # Single fused XLA elementwise pass (read + write n once) for the non-Pallas paths.
    return jnp.clip(x.astype(jnp.float32) * (1.0 / 6.0) + 0.5, 0.0, 1.0).astype(x.dtype)


def _block_bytes() -> int:
    """Per-block VMEM budget, generation-aware (best-effort probe)."""
    try:
        info = pltpu.get_tpu_info()
        # v7x is the generation with 64 MiB VMEM per TensorCore; its 3.2 TB/s HBM
        # makes the ~0.35 us per-step overhead a larger fraction of each block's
        # transfer, so spend more VMEM per block there.
        if getattr(info, "vmem_capacity_bytes", 128 << 20) <= (64 << 20):
            return _V7X_BLOCK_BYTES
    except Exception:
        # Capability probe only -- never block the kernel launch on it.
        pass
    return _DEFAULT_BLOCK_BYTES


def _pick_block_rows(rows: int, cols: int, itemsize: int, block_bytes: int) -> int:
    """Row tile rounded to the native sublane packing (8 f32 / 16 bf16 / 32 int8),
    ~block_bytes per block, or the full row extent when it already fits."""
    mult = max(8, 32 // max(int(itemsize), 1))
    target = max(mult, block_bytes // (cols * itemsize))
    target = (target // mult) * mult
    if target >= rows:
        return rows  # single full-extent block (allowed even if not a multiple of mult)
    return target


def _run_2d(x2d: jax.Array, block_rows: int) -> jax.Array:
    rows, cols = x2d.shape
    grid = (pl.cdiv(rows, block_rows),)
    spec = pl.BlockSpec((block_rows, cols), lambda i: (i, 0))
    # 2 input + 2 output pipeline buffers plus compiler scratch; explicitly raise
    # above v5e's 16 MiB default scoped-VMEM limit, stay under v7x's 64 MiB VMEM.
    block_nbytes = block_rows * cols * x2d.dtype.itemsize
    vmem_limit = max(32 << 20, 4 * block_nbytes + (8 << 20))
    return pl.pallas_call(
        _hardsigmoid_kernel,
        out_shape=jax.ShapeDtypeStruct((rows, cols), x2d.dtype),
        grid_spec=pltpu.PrefetchScalarGridSpec(
            num_scalar_prefetch=0,
            grid=grid,
            in_specs=[spec],
            out_specs=spec,
        ),
        compiler_params=pltpu.CompilerParams(
            dimension_semantics=("parallel",),
            vmem_limit_bytes=vmem_limit,
        ),
    )(x2d)


def hardsigmoid(x: jax.Array) -> jax.Array:
    orig_shape = x.shape
    n = x.size
    itemsize = x.dtype.itemsize

    # Tiny inputs: pallas launch + pipeline setup would dominate.
    if n == 0 or n * itemsize < _SMALL_BYTES:
        return _hardsigmoid_jnp(x)

    block_bytes = _block_bytes()

    # Fast path: numel is a multiple of 128 -> zero-copy reshape to a wide,
    # lane-dense slab (no pad, no slice), row axis tiled into fat blocks.
    for cols in _COL_CANDIDATES:
        if n % cols == 0:
            rows = n // cols
            block_rows = _pick_block_rows(rows, cols, itemsize, block_bytes)
            out2d = _run_2d(jnp.ravel(x).reshape(rows, cols), block_rows)
            return out2d.reshape(orig_shape)

    # Ragged path (numel not a multiple of 128): avoid the pad/slice round-trip by
    # running on the zero-copy (prod(leading), last_dim) view with full-width blocks.
    if x.ndim >= 2:
        cols = orig_shape[-1]
        rows = n // cols
        if cols >= 128 and cols * itemsize <= block_bytes:
            block_rows = _pick_block_rows(rows, cols, itemsize, block_bytes)
            out2d = _run_2d(x.reshape(rows, cols), block_rows)
            return out2d.reshape(orig_shape)

    # TODO(synk): column-tile ragged shapes whose trailing dim is tiny or larger than
    # the block budget instead of deferring to XLA's single fused elementwise pass.
    return _hardsigmoid_jnp(x)


if __name__ == "__main__":
    key = jax.random.PRNGKey(0)
    k1, k2, k3 = jax.random.split(key, 3)

    tests = [
        # Small demo shape consistent with the module -> fused-XLA small-input path.
        jax.random.normal(k1, (2, 4, 16, 16), dtype=jnp.float32) * 4.0,
        # KernelBench benchmark shape (numel % 128 == 0) -> zero-copy Pallas fast path.
        jax.random.normal(k2, (16, 16384), dtype=jnp.float32) * 4.0,
        # Non-128-aligned numel -> ragged Pallas path (full-width blocks, no pad/slice).
        jax.random.normal(k3, (100, 999), dtype=jnp.float32) * 4.0,
    ]

    for x in tests:
        y = jax.block_until_ready(hardsigmoid(x))
        ref = jnp.clip(x / 6.0 + 0.5, 0.0, 1.0)
        assert y.shape == x.shape and y.dtype == x.dtype
        err = float(jnp.max(jnp.abs(y - ref)))
        assert err < 1e-6, f"mismatch for shape {x.shape}: {err}"

    print("KERNEL_OK")
</pallas_src>

<mosaic_0001>
module attributes {stable_mosaic.version = 11 : i64} {
  func.func @_hardsigmoid_kernel(%arg0: i32, %arg1: memref<8x32768xf32, #tpu.memory_space<vmem>>, %arg2: memref<8x32768xf32, #tpu.memory_space<vmem>>) attributes {dimension_semantics = [#tpu.dimension_semantics<parallel>], iteration_bounds = array<i64: 1>, scalar_prefetch = 0 : i64, scratch_operands = 0 : i64, tpu.core_type = #tpu.core_type<tc>, window_params = [{transform_indices = @transform_0, window_bounds = array<i64: 8, 32768>}, {transform_indices = @transform_1, window_bounds = array<i64: 8, 32768>}]} {
    %c0 = arith.constant 0 : index
    %c0_0 = arith.constant 0 : index
    %0 = vector.load %arg1[%c0, %c0_0] : memref<8x32768xf32, #tpu.memory_space<vmem>>, vector<8x32768xf32>
    %cst = arith.constant 0.166666672 : f32
    %1 = vector.broadcast %cst : f32 to vector<8x32768xf32>
    %2 = arith.mulf %0, %1 : vector<8x32768xf32>
    %cst_1 = arith.constant 5.000000e-01 : f32
    %3 = vector.broadcast %cst_1 : f32 to vector<8x32768xf32>
    %4 = arith.addf %2, %3 : vector<8x32768xf32>
    %cst_2 = arith.constant 0.000000e+00 : f32
    %cst_3 = arith.constant 1.000000e+00 : f32
    %5 = vector.broadcast %cst_2 : f32 to vector<8x32768xf32>
    %6 = arith.maximumf %5, %4 : vector<8x32768xf32>
    %7 = vector.broadcast %cst_3 : f32 to vector<8x32768xf32>
    %8 = arith.minimumf %7, %6 : vector<8x32768xf32>
    %c0_4 = arith.constant 0 : index
    %c0_5 = arith.constant 0 : index
    %9 = vector.load %arg2[%c0_4, %c0_5] : memref<8x32768xf32, #tpu.memory_space<vmem>>, vector<8x32768xf32>
    tpu.vector_store %arg2[%c0_4, %c0_5], %8 {strides = array<i32>} : memref<8x32768xf32, #tpu.memory_space<vmem>>, vector<8x32768xf32>,
    return
  }
  func.func @transform_0(%arg0: i32) -> (i32, i32) {
    %c0_i32 = arith.constant 0 : i32
    %c0_i32_0 = arith.constant 0 : i32
    return %arg0, %c0_i32 : i32, i32
  }
  func.func @transform_1(%arg0: i32) -> (i32, i32) {
    %c0_i32 = arith.constant 0 : i32
    %c0_i32_0 = arith.constant 0 : i32
    return %arg0, %c0_i32 : i32, i32
  }
}

</mosaic_0001>

<llo_original>
// kernel: tpu_custom_call.1
$region0: #{tpu_custom_call.1}
  #allocation0 [shape = 'u32[]', space=smem, size = 0x4, offset = 0x4, fixed_abs, tag = 'smem constant byte address 0x4 - core index']
  #allocation1 [shape = 'u32[144,128]{1,0:T(1,128)}', space=vmem, size = 0x12000, scoped, tag = 'internal scratch']
  %s0 = inlined_call_operand.hbm [shape: f32[8,32768], index: 0, kind: input, shape index: {}]
  %s1 = inlined_call_operand.hbm [shape: f32[8,32768], index: 1, kind: output, shape index: {}]
  %s2 = sld [smem:[#allocation0]]
  $region18: #{tpu_custom_call.1} parent=0
    _
  %s4 = ssub.s32 1, %s2
  %s5 = scalar_select 0, %s4, %s2
  $region1: #{tpu_custom_call.1} parent=0
    #allocation2 [shape = 'u8[1048576]{0}', space=vmem, size = 0x100000, scoped, tag = 'input window, operand 0, single buffered']
    #allocation3 [shape = 's32[1]{0}', space=sflag, size = 0x4, scoped, tag = 'scoped memory for tpu_custom_call.1']
    #allocation4 [shape = 's32[1]{0}', space=sflag, size = 0x4, scoped, tag = 'scoped memory for tpu_custom_call.1']
    #allocation5 [shape = 'u8[1048576]{0}', space=vmem, size = 0x100000, scoped, tag = 'output window, operand 0, single buffered']
    %6 = vsyncpa [#allocation3], 0
    %7 = vsyncpa [#allocation4], 0
    // Predicated region
    $region2: #{tpu_custom_call.1} parent=1 // pred_check
      _
    $region3: #{tpu_custom_call.1} parent=1 // pred_check_branch
      %9 = sbr.rel (0) target = $region5
    $region4: #{tpu_custom_call.1} parent=1 // pred_region
      %s11 = ssub.s32 32768, 32768
      %12 = vsyncadd [#allocation3], %s11
      %s14 = sshll.u32 [#allocation2], 4
      %s15 = int_to_ptr.vmem [resolvable:$true] %s14
      %17 = dma.hbm_to_vmem [thread:$0]  %s0, 32768, %s15, [#allocation3]
    $region5: #{tpu_custom_call.1} parent=1 // pred_fallthru
      _
    // Predicated region
    $region6: #{tpu_custom_call.1} parent=1 // pred_check
      _
    $region7: #{tpu_custom_call.1} parent=1 // pred_check_branch
      %19 = sbr.rel (0) target = $region9
    $region8: #{tpu_custom_call.1} parent=1 // pred_region
      %20 = dma.done [#allocation3], 32768
    $region9: #{tpu_custom_call.1} parent=1 // pred_fallthru
      _
    %v21 = vld [vmem:[#allocation2] sm:$0xff]
    %v22 = vld [vmem:[#allocation2 + $0x8] sm:$0xff]
    %v23 = vld [vmem:[#allocation2 + $0x10] sm:$0xff]
    %v24 = vld [vmem:[#allocation2 + $0x18] sm:$0xff]
    %v25 = vld [vmem:[#allocation2 + $0x20] sm:$0xff]
    %v26 = vld [vmem:[#allocation2 + $0x28] sm:$0xff]
    %v27 = vld [vmem:[#allocation2 + $0x30] sm:$0xff]
    %v28 = vld [vmem:[#allocation2 + $0x38] sm:$0xff]
    %v29 = vld [vmem:[#allocation2 + $0x40] sm:$0xff]
    %v30 = vld [vmem:[#allocation2 + $0x48] sm:$0xff]
    %v31 = vld [vmem:[#allocation2 + $0x50] sm:$0xff]
    %v32 = vld [vmem:[#allocation2 + $0x58] sm:$0xff]
    %v33 = vld [vmem:[#allocation2 + $0x60] sm:$0xff]
    %v34 = vld [vmem:[#allocation2 + $0x68] sm:$0xff]
    %v35 = vld [vmem:[#allocation2 + $0x70] sm:$0xff]
    %v36 = vld [vmem:[#allocation2 + $0x78] sm:$0xff]
    %v37 = vld [vmem:[#allocation2 + $0x80] sm:$0xff]
    %v38 = vld [vmem:[#allocation2 + $0x88] sm:$0xff]
    %v39 = vld [vmem:[#allocation2 + $0x90] sm:$0xff]
    %v40 = vld [vmem:[#allocation2 + $0x98] sm:$0xff]
    %v41 = vld [vmem:[#allocation2 + $0xa0] sm:$0xff]
    %v42 = vld [vmem:[#allocation2 + $0xa8] sm:$0xff]
    %v43 = vld [vmem:[#allocation2 + $0xb0] sm:$0xff]
    %v44 = vld [vmem:[#allocation2 + $0xb8] sm:$0xff]
    %v45 = vld [vmem:[#allocation2 + $0xc0] sm:$0xff]
    %v46 = vld [vmem:[#allocation2 + $0xc8] sm:$0xff]
    %v47 = vld [vmem:[#allocation2 + $0xd0] sm:$0xff]
    %v48 = vld [vmem:[#allocation2 + $0xd8] sm:$0xff]
    %v49 = vld [vmem:[#allocation2 + $0xe0] sm:$0xff]
    %v50 = vld [vmem:[#allocation2 + $0xe8] sm:$0xff]
    %v51 = vld [vmem:[#allocation2 + $0xf0] sm:$0xff]
    %v52 = vld [vmem:[#allocation2 + $0xf8] sm:$0xff]
    %v53 = vld [vmem:[#allocation2 + $0x100] sm:$0xff]
    %v54 = vld [vmem:[#allocation2 + $0x108] sm:$0xff]
    %v55 = vld [vmem:[#allocation2 + $0x110] sm:$0xff]
    %v56 = vld [vmem:[#allocation2 + $0x118] sm:$0xff]
    %v57 = vld [vmem:[#allocation2 + $0x120] sm:$0xff]
    %v58 = vld [vmem:[#allocation2 + $0x128] sm:$0xff]
    %v59 = vld [vmem:[#allocation2 + $0x130] sm:$0xff]
    %v60 = vld [vmem:[#allocation2 + $0x138] sm:$0xff]
    %v61 = vld [vmem:[#allocation2 + $0x140] sm:$0xff]
    %v62 = vld [vmem:[#allocation2 + $0x148] sm:$0xff]
    %v63 = vld [vmem:[#allocation2 + $0x150] sm:$0xff]
    %v64 = vld [vmem:[#allocation2 + $0x158] sm:$0xff]
    %v65 = vld [vmem:[#allocation2 + $0x160] sm:$0xff]
    %v66 = vld [vmem:[#allocation2 + $0x168] sm:$0xff]
    %v67 = vld [vmem:[#allocation2 + $0x170] sm:$0xff]
    %v68 = vld [vmem:[#allocation2 + $0x178] sm:$0xff]
    %v69 = vld [vmem:[#allocation2 + $0x180] sm:$0xff]
    %v70 = vld [vmem:[#allocation2 + $0x188] sm:$0xff]
    %v71 = vld [vmem:[#allocation2 + $0x190] sm:$0xff]
    %v72 = vld [vmem:[#allocation2 + $0x198] sm:$0xff]
    %v73 = vld [vmem:[#allocation2 + $0x1a0] sm:$0xff]
    %v74 = vld [vmem:[#allocation2 + $0x1a8] sm:$0xff]
    %v75 = vld [vmem:[#allocation2 + $0x1b0] sm:$0xff]
    %v76 = vld [vmem:[#allocation2 + $0x1b8] sm:$0xff]
    %v77 = vld [vmem:[#allocation2 + $0x1c0] sm:$0xff]
    %v78 = vld [vmem:[#allocation2 + $0x1c8] sm:$0xff]
    %v79 = vld [vmem:[#allocation2 + $0x1d0] sm:$0xff]
    %v80 = vld [vmem:[#allocation2 + $0x1d8] sm:$0xff]
    %v81 = vld [vmem:[#allocation2 + $0x1e0] sm:$0xff]
    %v82 = vld [vmem:[#allocation2 + $0x1e8] sm:$0xff]
    %v83 = vld [vmem:[#allocation2 + $0x1f0] sm:$0xff]
    %v84 = vld [vmem:[#allocation2 + $0x1f8] sm:$0xff]
    %v85 = vld [vmem:[#allocation2 + $0x200] sm:$0xff]
    %v86 = vld [vmem:[#allocation2 + $0x208] sm:$0xff]
    %v87 = vld [vmem:[#allocation2 + $0x210] sm:$0xff]
    %v88 = vld [vmem:[#allocation2 + $0x218] sm:$0xff]
    %v89 = vld [vmem:[#allocation2 + $0x220] sm:$0xff]
    %v90 = vld [vmem:[#allocation2 + $0x228] sm:$0xff]
    %v91 = vld [vmem:[#allocation2 + $0x230] sm:$0xff]
    %v92 = vld [vmem:[#allocation2 + $0x238] sm:$0xff]
    %v93 = vld [vmem:[#allocation2 + $0x240] sm:$0xff]
    %v94 = vld [vmem:[#allocation2 + $0x248] sm:$0xff]
    %v95 = vld [vmem:[#allocation2 + $0x250] sm:$0xff]
    %v96 = vld [vmem:[#allocation2 + $0x258] sm:$0xff]
    %v97 = vld [vmem:[#allocation2 + $0x260] sm:$0xff]
    %v98 = vld [vmem:[#allocation2 + $0x268] sm:$0xff]
    %v99 = vld [vmem:[#allocation2 + $0x270] sm:$0xff]
    %v100 = vld [vmem:[#allocation2 + $0x278] sm:$0xff]
    %v101 = vld [vmem:[#allocation2 + $0x280] sm:$0xff]
    %v102 = vld [vmem:[#allocation2 + $0x288] sm:$0xff]
    %v103 = vld [vmem:[#allocation2 + $0x290] sm:$0xff]
    %v104 = vld [vmem:[#allocation2 + $0x298] sm:$0xff]
    %v105 = vld [vmem:[#allocation2 + $0x2a0] sm:$0xff]
    %v106 = vld [vmem:[#allocation2 + $0x2a8] sm:$0xff]
    %v107 = vld [vmem:[#allocation2 + $0x2b0] sm:$0xff]
    %v108 = vld [vmem:[#allocation2 + $0x2b8] sm:$0xff]
    %v109 = vld [vmem:[#allocation2 + $0x2c0] sm:$0xff]
    %v110 = vld [vmem:[#allocation2 + $0x2c8] sm:$0xff]
    %v111 = vld [vmem:[#allocation2 + $0x2d0] sm:$0xff]
    %v112 = vld [vmem:[#allocation2 + $0x2d8] sm:$0xff]
    %v113 = vld [vmem:[#allocation2 + $0x2e0] sm:$0xff]
    %v114 = vld [vmem:[#allocation2 + $0x2e8] sm:$0xff]
    %v115 = vld [vmem:[#allocation2 + $0x2f0] sm:$0xff]
    %v116 = vld [vmem:[#allocation2 + $0x2f8] sm:$0xff]
    %v117 = vld [vmem:[#allocation2 + $0x300] sm:$0xff]
    %v118 = vld [vmem:[#allocation2 + $0x308] sm:$0xff]
    %v119 = vld [vmem:[#allocation2 + $0x310] sm:$0xff]
    %v120 = vld [vmem:[#allocation2 + $0x318] sm:$0xff]
    %v121 = vld [vmem:[#allocation2 + $0x320] sm:$0xff]
    %v122 = vld [vmem:[#allocation2 + $0x328] sm:$0xff]
    %v123 = vld [vmem:[#allocation2 + $0x330] sm:$0xff]
    %v124 = vld [vmem:[#allocation2 + $0x338] sm:$0xff]
    %v125 = vld [vmem:[#allocation2 + $0x340] sm:$0xff]
    %v126 = vld [vmem:[#allocation2 + $0x348] sm:$0xff]
    %v127 = vld [vmem:[#allocation2 + $0x350] sm:$0xff]
    %v128 = vld [vmem:[#allocation2 + $0x358] sm:$0xff]
    %v129 = vld [vmem:[#allocation2 + $0x360] sm:$0xff]
    %v130 = vld [vmem:[#allocation2 + $0x368] sm:$0xff]
    %v131 = vld [vmem:[#allocation2 + $0x370] sm:$0xff]
    %v132 = vld [vmem:[#allocation2 + $0x378] sm:$0xff]
    %v133 = vld [vmem:[#allocation2 + $0x380] sm:$0xff]
    %v134 = vld [vmem:[#allocation2 + $0x388] sm:$0xff]
    %v135 = vld [vmem:[#allocation2 + $0x390] sm:$0xff]
    %v136 = vld [vmem:[#allocation2 + $0x398] sm:$0xff]
    %v137 = vld [vmem:[#allocation2 + $0x3a0] sm:$0xff]
    %v138 = vld [vmem:[#allocation2 + $0x3a8] sm:$0xff]
    %v139 = vld [vmem:[#allocation2 + $0x3b0] sm:$0xff]
    %v140 = vld [vmem:[#allocation2 + $0x3b8] sm:$0xff]
    %v141 = vld [vmem:[#allocation2 + $0x3c0] sm:$0xff]
    %v142 = vld [vmem:[#allocation2 + $0x3c8] sm:$0xff]
    %v143 = vld [vmem:[#allocation2 + $0x3d0] sm:$0xff]
    %v144 = vld [vmem:[#allocation2 + $0x3d8] sm:$0xff]
    %v145 = vld [vmem:[#allocation2 + $0x3e0] sm:$0xff]
    %v146 = vld [vmem:[#allocation2 + $0x3e8] sm:$0xff]
    %v147 = vld [vmem:[#allocation2 + $0x3f0] sm:$0xff]
    %v148 = vld [vmem:[#allocation2 + $0x3f8] sm:$0xff]
    %v149 = vld [vmem:[#allocation2 + $0x400] sm:$0xff]
    %v150 = vld [vmem:[#allocation2 + $0x408] sm:$0xff]
    %v151 = vld [vmem:[#allocation2 + $0x410] sm:$0xff]
    %v152 = vld [vmem:[#allocation2 + $0x418] sm:$0xff]
    %v153 = vld [vmem:[#allocation2 + $0x420] sm:$0xff]
    %v154 = vld [vmem:[#allocation2 + $0x428] sm:$0xff]
    %v155 = vld [vmem:[#allocation2 + $0x430] sm:$0xff]
    %v156 = vld [vmem:[#allocation2 + $0x438] sm:$0xff]
    %v157 = vld [vmem:[#allocation2 + $0x440] sm:$0xff]
    %v158 = vld [vmem:[#allocation2 + $0x448] sm:$0xff]
    %v159 = vld [vmem:[#allocation2 + $0x450] sm:$0xff]
    %v160 = vld [vmem:[#allocation2 + $0x458] sm:$0xff]
    %v161 = vld [vmem:[#allocation2 + $0x460] sm:$0xff]
    %v162 = vld [vmem:[#allocation2 + $0x468] sm:$0xff]
    %v163 = vld [vmem:[#allocation2 + $0x470] sm:$0xff]
    %v164 = vld [vmem:[#allocation2 + $0x478] sm:$0xff]
    %v165 = vld [vmem:[#allocation2 + $0x480] sm:$0xff]
    %v166 = vld [vmem:[#allocation2 + $0x488] sm:$0xff]
    %v167 = vld [vmem:[#allocation2 + $0x490] sm:$0xff]
    %v168 = vld [vmem:[#allocation2 + $0x498] sm:$0xff]
    %v169 = vld [vmem:[#allocation2 + $0x4a0] sm:$0xff]
    %v170 = vld [vmem:[#allocation2 + $0x4a8] sm:$0xff]
    %v171 = vld [vmem:[#allocation2 + $0x4b0] sm:$0xff]
    %v172 = vld [vmem:[#allocation2 + $0x4b8] sm:$0xff]
    %v173 = vld [vmem:[#allocation2 + $0x4c0] sm:$0xff]
    %v174 = vld [vmem:[#allocation2 + $0x4c8] sm:$0xff]
    %v175 = vld [vmem:[#allocation2 + $0x4d0] sm:$0xff]
    %v176 = vld [vmem:[#allocation2 + $0x4d8] sm:$0xff]
    %v177 = vld [vmem:[#allocation2 + $0x4e0] sm:$0xff]
    %v178 = vld [vmem:[#allocation2 + $0x4e8] sm:$0xff]
    %v179 = vld [vmem:[#allocation2 + $0x4f0] sm:$0xff]
    %v180 = vld [vmem:[#allocation2 + $0x4f8] sm:$0xff]
    %v181 = vld [vmem:[#allocation2 + $0x500] sm:$0xff]
    %v182 = vld [vmem:[#allocation2 + $0x508] sm:$0xff]
    %v183 = vld [vmem:[#allocation2 + $0x510] sm:$0xff]
    %v184 = vld [vmem:[#allocation2 + $0x518] sm:$0xff]
    %v185 = vld [vmem:[#allocation2 + $0x520] sm:$0xff]
    %v186 = vld [vmem:[#allocation2 + $0x528] sm:$0xff]
    %v187 = vld [vmem:[#allocation2 + $0x530] sm:$0xff]
    %v188 = vld [vmem:[#allocation2 + $0x538] sm:$0xff]
    %v189 = vld [vmem:[#allocation2 + $0x540] sm:$0xff]
    %v190 = vld [vmem:[#allocation2 + $0x548] sm:$0xff]
    %v191 = vld [vmem:[#allocation2 + $0x550] sm:$0xff]
    %v192 = vld [vmem:[#allocation2 + $0x558] sm:$0xff]
    %v193 = vld [vmem:[#allocation2 + $0x560] sm:$0xff]
    %v194 = vld [vmem:[#allocation2 + $0x568] sm:$0xff]
    %v195 = vld [vmem:[#allocation2 + $0x570] sm:$0xff]
    %v196 = vld [vmem:[#allocation2 + $0x578] sm:$0xff]
    %v197 = vld [vmem:[#allocation2 + $0x580] sm:$0xff]
    %v198 = vld [vmem:[#allocation2 + $0x588] sm:$0xff]
    %v199 = vld [vmem:[#allocation2 + $0x590] sm:$0xff]
    %v200 = vld [vmem:[#allocation2 + $0x598] sm:$0xff]
    %v201 = vld [vmem:[#allocation2 + $0x5a0] sm:$0xff]
    %v202 = vld [vmem:[#allocation2 + $0x5a8] sm:$0xff]
    %v203 = vld [vmem:[#allocation2 + $0x5b0] sm:$0xff]
    %v204 = vld [vmem:[#allocation2 + $0x5b8] sm:$0xff]
    %v205 = vld [vmem:[#allocation2 + $0x5c0] sm:$0xff]
    %v206 = vld [vmem:[#allocation2 + $0x5c8] sm:$0xff]
    %v207 = vld [vmem:[#allocation2 + $0x5d0] sm:$0xff]
    %v208 = vld [vmem:[#allocation2 + $0x5d8] sm:$0xff]
    %v209 = vld [vmem:[#allocation2 + $0x5e0] sm:$0xff]
    %v210 = vld [vmem:[#allocation2 + $0x5e8] sm:$0xff]
    %v211 = vld [vmem:[#allocation2 + $0x5f0] sm:$0xff]
    %v212 = vld [vmem:[#allocation2 + $0x5f8] sm:$0xff]
    %v213 = vld [vmem:[#allocation2 + $0x600] sm:$0xff]
    %v214 = vld [vmem:[#allocation2 + $0x608] sm:$0xff]
    %v215 = vld [vmem:[#allocation2 + $0x610] sm:$0xff]
    %v216 = vld [vmem:[#allocation2 + $0x618] sm:$0xff]
    %v217 = vld [vmem:[#allocation2 + $0x620] sm:$0xff]
    %v218 = vld [vmem:[#allocation2 + $0x628] sm:$0xff]
    %v219 = vld [vmem:[#allocation2 + $0x630] sm:$0xff]
    %v220 = vld [vmem:[#allocation2 + $0x638] sm:$0xff]
    %v221 = vld [vmem:[#allocation2 + $0x640] sm:$0xff]
    %v222 = vld [vmem:[#allocation2 + $0x648] sm:$0xff]
    %v223 = vld [vmem:[#allocation2 + $0x650] sm:$0xff]
    %v224 = vld [vmem:[#allocation2 + $0x658] sm:$0xff]
    %v225 = vld [vmem:[#allocation2 + $0x660] sm:$0xff]
    %v226 = vld [vmem:[#allocation2 + $0x668] sm:$0xff]
    %v227 = vld [vmem:[#allocation2 + $0x670] sm:$0xff]
    %v228 = vld [vmem:[#allocation2 + $0x678] sm:$0xff]
    %v229 = vld [vmem:[#allocation2 + $0x680] sm:$0xff]
    %v230 = vld [vmem:[#allocation2 + $0x688] sm:$0xff]
    %v231 = vld [vmem:[#allocation2 + $0x690] sm:$0xff]
    %v232 = vld [vmem:[#allocation2 + $0x698] sm:$0xff]
    %v233 = vld [vmem:[#allocation2 + $0x6a0] sm:$0xff]
    %v234 = vld [vmem:[#allocation2 + $0x6a8] sm:$0xff]
    %v235 = vld [vmem:[#allocation2 + $0x6b0] sm:$0xff]
    %v236 = vld [vmem:[#allocation2 + $0x6b8] sm:$0xff]
    %v237 = vld [vmem:[#allocation2 + $0x6c0] sm:$0xff]
    %v238 = vld [vmem:[#allocation2 + $0x6c8] sm:$0xff]
    %v239 = vld [vmem:[#allocation2 + $0x6d0] sm:$0xff]
    %v240 = vld [vmem:[#allocation2 + $0x6d8] sm:$0xff]
    %v241 = vld [vmem:[#allocation2 + $0x6e0] sm:$0xff]
    %v242 = vld [vmem:[#allocation2 + $0x6e8] sm:$0xff]
    %v243 = vld [vmem:[#allocation2 + $0x6f0] sm:$0xff]
    %v244 = vld [vmem:[#allocation2 + $0x6f8] sm:$0xff]
    %v245 = vld [vmem:[#allocation2 + $0x700] sm:$0xff]
    %v246 = vld [vmem:[#allocation2 + $0x708] sm:$0xff]
    %v247 = vld [vmem:[#allocation2 + $0x710] sm:$0xff]
    %v248 = vld [vmem:[#allocation2 + $0x718] sm:$0xff]
    %v249 = vld [vmem:[#allocation2 + $0x720] sm:$0xff]
    %v250 = vld [vmem:[#allocation2 + $0x728] sm:$0xff]
    %v251 = vld [vmem:[#allocation2 + $0x730] sm:$0xff]
    %v252 = vld [vmem:[#allocation2 + $0x738] sm:$0xff]
    %v253 = vld [vmem:[#allocation2 + $0x740] sm:$0xff]
    %v254 = vld [vmem:[#allocation2 + $0x748] sm:$0xff]
    %v255 = vld [vmem:[#allocation2 + $0x750] sm:$0xff]
    %v256 = vld [vmem:[#allocation2 + $0x758] sm:$0xff]
    %v257 = vld [vmem:[#allocation2 + $0x760] sm:$0xff]
    %v258 = vld [vmem:[#allocation2 + $0x768] sm:$0xff]
    %v259 = vld [vmem:[#allocation2 + $0x770] sm:$0xff]
    %v260 = vld [vmem:[#allocation2 + $0x778] sm:$0xff]
    %v261 = vld [vmem:[#allocation2 + $0x780] sm:$0xff]
    %v262 = vld [vmem:[#allocation2 + $0x788] sm:$0xff]
    %v263 = vld [vmem:[#allocation2 + $0x790] sm:$0xff]
    %v264 = vld [vmem:[#allocation2 + $0x798] sm:$0xff]
    %v265 = vld [vmem:[#allocation2 + $0x7a0] sm:$0xff]
    %v266 = vld [vmem:[#allocation2 + $0x7a8] sm:$0xff]
    %v267 = vld [vmem:[#allocation2 + $0x7b0] sm:$0xff]
    %v268 = vld [vmem:[#allocation2 + $0x7b8] sm:$0xff]
    %v269 = vld [vmem:[#allocation2 + $0x7c0] sm:$0xff]
    %v270 = vld [vmem:[#allocation2 + $0x7c8] sm:$0xff]
    %v271 = vld [vmem:[#allocation2 + $0x7d0] sm:$0xff]
    %v272 = vld [vmem:[#allocation2 + $0x7d8] sm:$0xff]
    %v273 = vld [vmem:[#allocation2 + $0x7e0] sm:$0xff]
    %v274 = vld [vmem:[#allocation2 + $0x7e8] sm:$0xff]
    %v275 = vld [vmem:[#allocation2 + $0x7f0] sm:$0xff]
    %v276 = vld [vmem:[#allocation2 + $0x7f8] sm:$0xff]
    %v277 = vmul.f32 %v21, 0.16666667
    %v278 = vmul.f32 %v22, 0.16666667
    %v279 = vmul.f32 %v23, 0.16666667
    %v280 = vmul.f32 %v24, 0.16666667
    %v281 = vmul.f32 %v25, 0.16666667
    %v282 = vmul.f32 %v26, 0.16666667
    %v283 = vmul.f32 %v27, 0.16666667
    %v284 = vmul.f32 %v28, 0.16666667
    %v285 = vmul.f32 %v29, 0.16666667
    %v286 = vmul.f32 %v30, 0.16666667
    %v287 = vmul.f32 %v31, 0.16666667
    %v288 = vmul.f32 %v32, 0.16666667
    %v289 = vmul.f32 %v33, 0.16666667
    %v290 = vmul.f32 %v34, 0.16666667
    %v291 = vmul.f32 %v35, 0.16666667
    %v292 = vmul.f32 %v36, 0.16666667
    %v293 = vmul.f32 %v37, 0.16666667
    %v294 = vmul.f32 %v38, 0.16666667
    %v295 = vmul.f32 %v39, 0.16666667
    %v296 = vmul.f32 %v40, 0.16666667
    %v297 = vmul.f32 %v41, 0.16666667
    %v298 = vmul.f32 %v42, 0.16666667
    %v299 = vmul.f32 %v43, 0.16666667
    %v300 = vmul.f32 %v44, 0.16666667
    %v301 = vmul.f32 %v45, 0.16666667
    %v302 = vmul.f32 %v46, 0.16666667
    %v303 = vmul.f32 %v47, 0.16666667
    %v304 = vmul.f32 %v48, 0.16666667
    %v305 = vmul.f32 %v49, 0.16666667
    %v306 = vmul.f32 %v50, 0.16666667
    %v307 = vmul.f32 %v51, 0.16666667
    %v308 = vmul.f32 %v52, 0.16666667
    %v309 = vmul.f32 %v53, 0.16666667
    %v310 = vmul.f32 %v54, 0.16666667
    %v311 = vmul.f32 %v55, 0.16666667
    %v312 = vmul.f32 %v56, 0.16666667
    %v313 = vmul.f32 %v57, 0.16666667
    %v314 = vmul.f32 %v58, 0.16666667
    %v315 = vmul.f32 %v59, 0.16666667
    %v316 = vmul.f32 %v60, 0.16666667
    %v317 = vmul.f32 %v61, 0.16666667
    %v318 = vmul.f32 %v62, 0.16666667
    %v319 = vmul.f32 %v63, 0.16666667
    %v320 = vmul.f32 %v64, 0.16666667
    %v321 = vmul.f32 %v65, 0.16666667
    %v322 = vmul.f32 %v66, 0.16666667
    %v323 = vmul.f32 %v67, 0.16666667
    %v324 = vmul.f32 %v68, 0.16666667
    %v325 = vmul.f32 %v69, 0.16666667
    %v326 = vmul.f32 %v70, 0.16666667
    %v327 = vmul.f32 %v71, 0.16666667
    %v328 = vmul.f32 %v72, 0.16666667
    %v329 = vmul.f32 %v73, 0.16666667
    %v330 = vmul.f32 %v74, 0.16666667
    %v331 = vmul.f32 %v75, 0.16666667
    %v332 = vmul.f32 %v76, 0.16666667
    %v333 = vmul.f32 %v77, 0.16666667
    %v334 = vmul.f32 %v78, 0.16666667
    %v335 = vmul.f32 %v79, 0.16666667
    %v336 = vmul.f32 %v80, 0.16666667
    %v337 = vmul.f32 %v81, 0.16666667
    %v338 = vmul.f32 %v82, 0.16666667
    %v339 = vmul.f32 %v83, 0.16666667
    %v340 = vmul.f32 %v84, 0.16666667
    %v341 = vmul.f32 %v85, 0.16666667
    %v342 = vmul.f32 %v86, 0.16666667
    %v343 = vmul.f32 %v87, 0.16666667
    %v344 = vmul.f32 %v88, 0.16666667
    %v345 = vmul.f32 %v89, 0.16666667
    %v346 = vmul.f32 %v90, 0.16666667
    %v347 = vmul.f32 %v91, 0.16666667
    %v348 = vmul.f32 %v92, 0.16666667
    %v349 = vmul.f32 %v93, 0.16666667
    %v350 = vmul.f32 %v94, 0.16666667
    %v351 = vmul.f32 %v95, 0.16666667
    %v352 = vmul.f32 %v96, 0.16666667
    %v353 = vmul.f32 %v97, 0.16666667
    %v354 = vmul.f32 %v98, 0.16666667
    %v355 = vmul.f32 %v99, 0.16666667
    %v356 = vmul.f32 %v100, 0.16666667
    %v357 = vmul.f32 %v101, 0.16666667
    %v358 = vmul.f32 %v102, 0.16666667
    %v359 = vmul.f32 %v103, 0.16666667
    %v360 = vmul.f32 %v104, 0.16666667
    %v361 = vmul.f32 %v105, 0.16666667
    %v362 = vmul.f32 %v106, 0.16666667
    %v363 = vmul.f32 %v107, 0.16666667
    %v364 = vmul.f32 %v108, 0.16666667
    %v365 = vmul.f32 %v109, 0.16666667
    %v366 = vmul.f32 %v110, 0.16666667
    %v367 = vmul.f32 %v111, 0.16666667
    %v368 = vmul.f32 %v112, 0.16666667
    %v369 = vmul.f32 %v113, 0.16666667
    %v370 = vmul.f32 %v114, 0.16666667
    %v371 = vmul.f32 %v115, 0.16666667
    %v372 = vmul.f32 %v116, 0.16666667
    %v373 = vmul.f32 %v117, 0.16666667
    %v374 = vmul.f32 %v118, 0.16666667
    %v375 = vmul.f32 %v119, 0.16666667
    %v376 = vmul.f32 %v120, 0.16666667
    %v377 = vmul.f32 %v121, 0.16666667
    %v378 = vmul.f32 %v122, 0.16666667
    %v379 = vmul.f32 %v123, 0.16666667
    %v380 = vmul.f32 %v124, 0.16666667
    %v381 = vmul.f32 %v125, 0.16666667
    %v382 = vmul.f32 %v126, 0.16666667
    %v383 = vmul.f32 %v127, 0.16666667
    %v384 = vmul.f32 %v128, 0.16666667
    %v385 = vmul.f32 %v129, 0.16666667
    %v386 = vmul.f32 %v130, 0.16666667
    %v387 = vmul.f32 %v131, 0.16666667
    %v388 = vmul.f32 %v132, 0.16666667
    %v389 = vmul.f32 %v133, 0.16666667
    %v390 = vmul.f32 %v134, 0.16666667
    %v391 = vmul.f32 %v135, 0.16666667
    %v392 = vmul.f32 %v136, 0.16666667
    %v393 = vmul.f32 %v137, 0.16666667
    %v394 = vmul.f32 %v138, 0.16666667
    %v395 = vmul.f32 %v139, 0.16666667
    %v396 = vmul.f32 %v140, 0.16666667
    %v397 = vmul.f32 %v141, 0.16666667
    %v398 = vmul.f32 %v142, 0.16666667
    %v399 = vmul.f32 %v143, 0.16666667
    %v400 = vmul.f32 %v144, 0.16666667
    %v401 = vmul.f32 %v145, 0.16666667
    %v402 = vmul.f32 %v146, 0.16666667
    %v403 = vmul.f32 %v147, 0.16666667
    %v404 = vmul.f32 %v148, 0.16666667
    %v405 = vmul.f32 %v149, 0.16666667
    %v406 = vmul.f32 %v150, 0.16666667
    %v407 = vmul.f32 %v151, 0.16666667
    %v408 = vmul.f32 %v152, 0.16666667
    %v409 = vmul.f32 %v153, 0.16666667
    %v410 = vmul.f32 %v154, 0.16666667
    %v411 = vmul.f32 %v155, 0.16666667
    %v412 = vmul.f32 %v156, 0.16666667
    %v413 = vmul.f32 %v157, 0.16666667
    %v414 = vmul.f32 %v158, 0.16666667
    %v415 = vmul.f32 %v159, 0.16666667
    %v416 = vmul.f32 %v160, 0.16666667
    %v417 = vmul.f32 %v161, 0.16666667
    %v418 = vmul.f32 %v162, 0.16666667
    %v419 = vmul.f32 %v163, 0.16666667
    %v420 = vmul.f32 %v164, 0.16666667
    %v421 = vmul.f32 %v165, 0.16666667
    %v422 = vmul.f32 %v166, 0.16666667
    %v423 = vmul.f32 %v167, 0.16666667
    %v424 = vmul.f32 %v168, 0.16666667
    %v425 = vmul.f32 %v169, 0.16666667
    %v426 = vmul.f32 %v170, 0.16666667
    %v427 = vmul.f32 %v171, 0.16666667
    %v428 = vmul.f32 %v172, 0.16666667
    %v429 = vmul.f32 %v173, 0.16666667
    %v430 = vmul.f32 %v174, 0.16666667
    %v431 = vmul.f32 %v175, 0.16666667
    %v432 = vmul.f32 %v176, 0.16666667
    %v433 = vmul.f32 %v177, 0.16666667
    %v434 = vmul.f32 %v178, 0.16666667
    %v435 = vmul.f32 %v179, 0.16666667
    %v436 = vmul.f32 %v180, 0.16666667
    %v437 = vmul.f32 %v181, 0.16666667
    %v438 = vmul.f32 %v182, 0.16666667
    %v439 = vmul.f32 %v183, 0.16666667
    %v440 = vmul.f32 %v184, 0.16666667
    %v441 = vmul.f32 %v185, 0.16666667
    %v442 = vmul.f32 %v186, 0.16666667
    %v443 = vmul.f32 %v187, 0.16666667
    %v444 = vmul.f32 %v188, 0.16666667
    %v445 = vmul.f32 %v189, 0.16666667
    %v446 = vmul.f32 %v190, 0.16666667
    %v447 = vmul.f32 %v191, 0.16666667
    %v448 = vmul.f32 %v192, 0.16666667
    %v449 = vmul.f32 %v193, 0.16666667
    %v450 = vmul.f32 %v194, 0.16666667
    %v451 = vmul.f32 %v195, 0.16666667
    %v452 = vmul.f32 %v196, 0.16666667
    %v453 = vmul.f32 %v197, 0.16666667
    %v454 = vmul.f32 %v198, 0.16666667
    %v455 = vmul.f32 %v199, 0.16666667
    %v456 = vmul.f32 %v200, 0.16666667
    %v457 = vmul.f32 %v201, 0.16666667
    %v458 = vmul.f32 %v202, 0.16666667
    %v459 = vmul.f32 %v203, 0.16666667
    %v460 = vmul.f32 %v204, 0.16666667
    %v461 = vmul.f32 %v205, 0.16666667
    %v462 = vmul.f32 %v206, 0.16666667
    %v463 = vmul.f32 %v207, 0.16666667
    %v464 = vmul.f32 %v208, 0.16666667
    %v465 = vmul.f32 %v209, 0.16666667
    %v466 = vmul.f32 %v210, 0.16666667
    %v467 = vmul.f32 %v211, 0.16666667
    %v468 = vmul.f32 %v212, 0.16666667
    %v469 = vmul.f32 %v213, 0.16666667
    %v470 = vmul.f32 %v214, 0.16666667
    %v471 = vmul.f32 %v215, 0.16666667
    %v472 = vmul.f32 %v216, 0.16666667
    %v473 = vmul.f32 %v217, 0.16666667
    %v474 = vmul.f32 %v218, 0.16666667
    %v475 = vmul.f32 %v219, 0.16666667
    %v476 = vmul.f32 %v220, 0.16666667
    %v477 = vmul.f32 %v221, 0.16666667
    %v478 = vmul.f32 %v222, 0.16666667
    %v479 = vmul.f32 %v223, 0.16666667
    %v480 = vmul.f32 %v224, 0.16666667
    %v481 = vmul.f32 %v225, 0.16666667
    %v482 = vmul.f32 %v226, 0.16666667
    %v483 = vmul.f32 %v227, 0.16666667
    %v484 = vmul.f32 %v228, 0.16666667
    %v485 = vmul.f32 %v229, 0.16666667
    %v486 = vmul.f32 %v230, 0.16666667
    %v487 = vmul.f32 %v231, 0.16666667
    %v488 = vmul.f32 %v232, 0.16666667
    %v489 = vmul.f32 %v233, 0.16666667
    %v490 = vmul.f32 %v234, 0.16666667
    %v491 = vmul.f32 %v235, 0.16666667
    %v492 = vmul.f32 %v236, 0.16666667
    %v493 = vmul.f32 %v237, 0.16666667
    %v494 = vmul.f32 %v238, 0.16666667
    %v495 = vmul.f32 %v239, 0.16666667
    %v496 = vmul.f32 %v240, 0.16666667
    %v497 = vmul.f32 %v241, 0.16666667
    %v498 = vmul.f32 %v242, 0.16666667
    %v499 = vmul.f32 %v243, 0.16666667
    %v500 = vmul.f32 %v244, 0.16666667
    %v501 = vmul.f32 %v245, 0.16666667
    %v502 = vmul.f32 %v246, 0.16666667
    %v503 = vmul.f32 %v247, 0.16666667
    %v504 = vmul.f32 %v248, 0.16666667
    %v505 = vmul.f32 %v249, 0.16666667
    %v506 = vmul.f32 %v250, 0.16666667
    %v507 = vmul.f32 %v251, 0.16666667
    %v508 = vmul.f32 %v252, 0.16666667
    %v509 = vmul.f32 %v253, 0.16666667
    %v510 = vmul.f32 %v254, 0.16666667
    %v511 = vmul.f32 %v255, 0.16666667
    %v512 = vmul.f32 %v256, 0.16666667
    %v513 = vmul.f32 %v257, 0.16666667
    %v514 = vmul.f32 %v258, 0.16666667
    %v515 = vmul.f32 %v259, 0.16666667
    %v516 = vmul.f32 %v260, 0.16666667
    %v517 = vmul.f32 %v261, 0.16666667
    %v518 = vmul.f32 %v262, 0.16666667
    %v519 = vmul.f32 %v263, 0.16666667
    %v520 = vmul.f32 %v264, 0.16666667
    %v521 = vmul.f32 %v265, 0.16666667
    %v522 = vmul.f32 %v266, 0.16666667
    %v523 = vmul.f32 %v267, 0.16666667
    %v524 = vmul.f32 %v268, 0.16666667
    %v525 = vmul.f32 %v269, 0.16666667
    %v526 = vmul.f32 %v270, 0.16666667
    %v527 = vmul.f32 %v271, 0.16666667
    %v528 = vmul.f32 %v272, 0.16666667
    %v529 = vmul.f32 %v273, 0.16666667
    %v530 = vmul.f32 %v274, 0.16666667
    %v531 = vmul.f32 %v275, 0.16666667
    %v532 = vmul.f32 %v276, 0.16666667
    %v533 = vadd.f32 %v277, 0.5
    %v534 = vadd.f32 %v278, 0.5
    %v535 = vadd.f32 %v279, 0.5
    %v536 = vadd.f32 %v280, 0.5
    %v537 = vadd.f32 %v281, 0.5
    %v538 = vadd.f32 %v282, 0.5
    %v539 = vadd.f32 %v283, 0.5
    %v540 = vadd.f32 %v284, 0.5
    %v541 = vadd.f32 %v285, 0.5
    %v542 = vadd.f32 %v286, 0.5
    %v543 = vadd.f32 %v287, 0.5
    %v544 = vadd.f32 %v288, 0.5
    %v545 = vadd.f32 %v289, 0.5
    %v546 = vadd.f32 %v290, 0.5
    %v547 = vadd.f32 %v291, 0.5
    %v548 = vadd.f32 %v292, 0.5
    %v549 = vadd.f32 %v293, 0.5
    %v550 = vadd.f32 %v294, 0.5
    %v551 = vadd.f32 %v295, 0.5
    %v552 = vadd.f32 %v296, 0.5
    %v553 = vadd.f32 %v297, 0.5
    %v554 = vadd.f32 %v298, 0.5
    %v555 = vadd.f32 %v299, 0.5
    %v556 = vadd.f32 %v300, 0.5
    %v557 = vadd.f32 %v301, 0.5
    %v558 = vadd.f32 %v302, 0.5
    %v559 = vadd.f32 %v303, 0.5
    %v560 = vadd.f32 %v304, 0.5
    %v561 = vadd.f32 %v305, 0.5
    %v562 = vadd.f32 %v306, 0.5
    %v563 = vadd.f32 %v307, 0.5
    %v564 = vadd.f32 %v308, 0.5
    %v565 = vadd.f32 %v309, 0.5
    %v566 = vadd.f32 %v310, 0.5
    %v567 = vadd.f32 %v311, 0.5
    %v568 = vadd.f32 %v312, 0.5
    %v569 = vadd.f32 %v313, 0.5
    %v570 = vadd.f32 %v314, 0.5
    %v571 = vadd.f32 %v315, 0.5
    %v572 = vadd.f32 %v316, 0.5
    %v573 = vadd.f32 %v317, 0.5
    %v574 = vadd.f32 %v318, 0.5
    %v575 = vadd.f32 %v319, 0.5
    %v576 = vadd.f32 %v320, 0.5
    %v577 = vadd.f32 %v321, 0.5
    %v578 = vadd.f32 %v322, 0.5
    %v579 = vadd.f32 %v323, 0.5
    %v580 = vadd.f32 %v324, 0.5
    %v581 = vadd.f32 %v325, 0.5
    %v582 = vadd.f32 %v326, 0.5
    %v583 = vadd.f32 %v327, 0.5
    %v584 = vadd.f32 %v328, 0.5
    %v585 = vadd.f32 %v329, 0.5
    %v586 = vadd.f32 %v330, 0.5
    %v587 = vadd.f32 %v331, 0.5
    %v588 = vadd.f32 %v332, 0.5
    %v589 = vadd.f32 %v333, 0.5
    %v590 = vadd.f32 %v334, 0.5
    %v591 = vadd.f32 %v335, 0.5
    %v592 = vadd.f32 %v336, 0.5
    %v593 = vadd.f32 %v337, 0.5
    %v594 = vadd.f32 %v338, 0.5
    %v595 = vadd.f32 %v339, 0.5
    %v596 = vadd.f32 %v340, 0.5
    %v597 = vadd.f32 %v341, 0.5
    %v598 = vadd.f32 %v342, 0.5
    %v599 = vadd.f32 %v343, 0.5
    %v600 = vadd.f32 %v344, 0.5
    %v601 = vadd.f32 %v345, 0.5
    %v602 = vadd.f32 %v346, 0.5
    %v603 = vadd.f32 %v347, 0.5
    %v604 = vadd.f32 %v348, 0.5
    %v605 = vadd.f32 %v349, 0.5
    %v606 = vadd.f32 %v350, 0.5
    %v607 = vadd.f32 %v351, 0.5
    %v608 = vadd.f32 %v352, 0.5
    %v609 = vadd.f32 %v353, 0.5
    %v610 = vadd.f32 %v354, 0.5
    %v611 = vadd.f32 %v355, 0.5
    %v612 = vadd.f32 %v356, 0.5
    %v613 = vadd.f32 %v357, 0.5
    %v614 = vadd.f32 %v358, 0.5
    %v615 = vadd.f32 %v359, 0.5
    %v616 = vadd.f32 %v360, 0.5
    %v617 = vadd.f32 %v361, 0.5
    %v618 = vadd.f32 %v362, 0.5
    %v619 = vadd.f32 %v363, 0.5
    %v620 = vadd.f32 %v364, 0.5
    %v621 = vadd.f32 %v365, 0.5
    %v622 = vadd.f32 %v366, 0.5
    %v623 = vadd.f32 %v367, 0.5
    %v624 = vadd.f32 %v368, 0.5
    %v625 = vadd.f32 %v369, 0.5
    %v626 = vadd.f32 %v370, 0.5
    %v627 = vadd.f32 %v371, 0.5
    %v628 = vadd.f32 %v372, 0.5
    %v629 = vadd.f32 %v373, 0.5
    %v630 = vadd.f32 %v374, 0.5
    %v631 = vadd.f32 %v375, 0.5
    %v632 = vadd.f32 %v376, 0.5
    %v633 = vadd.f32 %v377, 0.5
    %v634 = vadd.f32 %v378, 0.5
    %v635 = vadd.f32 %v379, 0.5
    %v636 = vadd.f32 %v380, 0.5
    %v637 = vadd.f32 %v381, 0.5
    %v638 = vadd.f32 %v382, 0.5
    %v639 = vadd.f32 %v383, 0.5
    %v640 = vadd.f32 %v384, 0.5
    %v641 = vadd.f32 %v385, 0.5
    %v642 = vadd.f32 %v386, 0.5
    %v643 = vadd.f32 %v387, 0.5
    %v644 = vadd.f32 %v388, 0.5
    %v645 = vadd.f32 %v389, 0.5
    %v646 = vadd.f32 %v390, 0.5
    %v647 = vadd.f32 %v391, 0.5
    %v648 = vadd.f32 %v392, 0.5
    %v649 = vadd.f32 %v393, 0.5
    %v650 = vadd.f32 %v394, 0.5
    %v651 = vadd.f32 %v395, 0.5
    %v652 = vadd.f32 %v396, 0.5
    %v653 = vadd.f32 %v397, 0.5
    %v654 = vadd.f32 %v398, 0.5
    %v655 = vadd.f32 %v399, 0.5
    %v656 = vadd.f32 %v400, 0.5
    %v657 = vadd.f32 %v401, 0.5
    %v658 = vadd.f32 %v402, 0.5
    %v659 = vadd.f32 %v403, 0.5
    %v660 = vadd.f32 %v404, 0.5
    %v661 = vadd.f32 %v405, 0.5
    %v662 = vadd.f32 %v406, 0.5
    %v663 = vadd.f32 %v407, 0.5
    %v664 = vadd.f32 %v408, 0.5
    %v665 = vadd.f32 %v409, 0.5
    %v666 = vadd.f32 %v410, 0.5
    %v667 = vadd.f32 %v411, 0.5
    %v668 = vadd.f32 %v412, 0.5
    %v669 = vadd.f32 %v413, 0.5
    %v670 = vadd.f32 %v414, 0.5
    %v671 = vadd.f32 %v415, 0.5
    %v672 = vadd.f32 %v416, 0.5
    %v673 = vadd.f32 %v417, 0.5
    %v674 = vadd.f32 %v418, 0.5
    %v675 = vadd.f32 %v419, 0.5
    %v676 = vadd.f32 %v420, 0.5
    %v677 = vadd.f32 %v421, 0.5
    %v678 = vadd.f32 %v422, 0.5
    %v679 = vadd.f32 %v423, 0.5
    %v680 = vadd.f32 %v424, 0.5
    %v681 = vadd.f32 %v425, 0.5
    %v682 = vadd.f32 %v426, 0.5
    %v683 = vadd.f32 %v427, 0.5
    %v684 = vadd.f32 %v428, 0.5
    %v685 = vadd.f32 %v429, 0.5
    %v686 = vadd.f32 %v430, 0.5
    %v687 = vadd.f32 %v431, 0.5
    %v688 = vadd.f32 %v432, 0.5
    %v689 = vadd.f32 %v433, 0.5
    %v690 = vadd.f32 %v434, 0.5
    %v691 = vadd.f32 %v435, 0.5
    %v692 = vadd.f32 %v436, 0.5
    %v693 = vadd.f32 %v437, 0.5
    %v694 = vadd.f32 %v438, 0.5
    %v695 = vadd.f32 %v439, 0.5
    %v696 = vadd.f32 %v440, 0.5
    %v697 = vadd.f32 %v441, 0.5
    %v698 = vadd.f32 %v442, 0.5
    %v699 = vadd.f32 %v443, 0.5
    %v700 = vadd.f32 %v444, 0.5
    %v701 = vadd.f32 %v445, 0.5
    %v702 = vadd.f32 %v446, 0.5
    %v703 = vadd.f32 %v447, 0.5
    %v704 = vadd.f32 %v448, 0.5
    %v705 = vadd.f32 %v449, 0.5
    %v706 = vadd.f32 %v450, 0.5
    %v707 = vadd.f32 %v451, 0.5
    %v708 = vadd.f32 %v452, 0.5
    %v709 = vadd.f32 %v453, 0.5
    %v710 = vadd.f32 %v454, 0.5
    %v711 = vadd.f32 %v455, 0.5
    %v712 = vadd.f32 %v456, 0.5
    %v713 = vadd.f32 %v457, 0.5
    %v714 = vadd.f32 %v458, 0.5
    %v715 = vadd.f32 %v459, 0.5
    %v716 = vadd.f32 %v460, 0.5
    %v717 = vadd.f32 %v461, 0.5
    %v718 = vadd.f32 %v462, 0.5
    %v719 = vadd.f32 %v463, 0.5
    %v720 = vadd.f32 %v464, 0.5
    %v721 = vadd.f32 %v465, 0.5
    %v722 = vadd.f32 %v466, 0.5
    %v723 = vadd.f32 %v467, 0.5
    %v724 = vadd.f32 %v468, 0.5
    %v725 = vadd.f32 %v469, 0.5
    %v726 = vadd.f32 %v470, 0.5
    %v727 = vadd.f32 %v471, 0.5
    %v728 = vadd.f32 %v472, 0.5
    %v729 = vadd.f32 %v473, 0.5
    %v730 = vadd.f32 %v474, 0.5
    %v731 = vadd.f32 %v475, 0.5
    %v732 = vadd.f32 %v476, 0.5
    %v733 = vadd.f32 %v477, 0.5
    %v734 = vadd.f32 %v478, 0.5
    %v735 = vadd.f32 %v479, 0.5
    %v736 = vadd.f32 %v480, 0.5
    %v737 = vadd.f32 %v481, 0.5
    %v738 = vadd.f32 %v482, 0.5
    %v739 = vadd.f32 %v483, 0.5
    %v740 = vadd.f32 %v484, 0.5
    %v741 = vadd.f32 %v485, 0.5
    %v742 = vadd.f32 %v486, 0.5
    %v743 = vadd.f32 %v487, 0.5
    %v744 = vadd.f32 %v488, 0.5
    %v745 = vadd.f32 %v489, 0.5
    %v746 = vadd.f32 %v490, 0.5
    %v747 = vadd.f32 %v491, 0.5
    %v748 = vadd.f32 %v492, 0.5
    %v749 = vadd.f32 %v493, 0.5
    %v750 = vadd.f32 %v494, 0.5
    %v751 = vadd.f32 %v495, 0.5
    %v752 = vadd.f32 %v496, 0.5
    %v753 = vadd.f32 %v497, 0.5
    %v754 = vadd.f32 %v498, 0.5
    %v755 = vadd.f32 %v499, 0.5
    %v756 = vadd.f32 %v500, 0.5
    %v757 = vadd.f32 %v501, 0.5
    %v758 = vadd.f32 %v502, 0.5
    %v759 = vadd.f32 %v503, 0.5
    %v760 = vadd.f32 %v504, 0.5
    %v761 = vadd.f32 %v505, 0.5
    %v762 = vadd.f32 %v506, 0.5
    %v763 = vadd.f32 %v507, 0.5
    %v764 = vadd.f32 %v508, 0.5
    %v765 = vadd.f32 %v509, 0.5
    %v766 = vadd.f32 %v510, 0.5
    %v767 = vadd.f32 %v511, 0.5
    %v768 = vadd.f32 %v512, 0.5
    %v769 = vadd.f32 %v513, 0.5
    %v770 = vadd.f32 %v514, 0.5
    %v771 = vadd.f32 %v515, 0.5
    %v772 = vadd.f32 %v516, 0.5
    %v773 = vadd.f32 %v517, 0.5
    %v774 = vadd.f32 %v518, 0.5
    %v775 = vadd.f32 %v519, 0.5
    %v776 = vadd.f32 %v520, 0.5
    %v777 = vadd.f32 %v521, 0.5
    %v778 = vadd.f32 %v522, 0.5
    %v779 = vadd.f32 %v523, 0.5
    %v780 = vadd.f32 %v524, 0.5
    %v781 = vadd.f32 %v525, 0.5
    %v782 = vadd.f32 %v526, 0.5
    %v783 = vadd.f32 %v527, 0.5
    %v784 = vadd.f32 %v528, 0.5
    %v785 = vadd.f32 %v529, 0.5
    %v786 = vadd.f32 %v530, 0.5
    %v787 = vadd.f32 %v531, 0.5
    %v788 = vadd.f32 %v532, 0.5
    %v789 = vmax.f32 %v533, 0.0
    %v790 = vmax.f32 %v534, 0.0
    %v791 = vmax.f32 %v535, 0.0
    %v792 = vmax.f32 %v536, 0.0
    %v793 = vmax.f32 %v537, 0.0
    %v794 = vmax.f32 %v538, 0.0
    %v795 = vmax.f32 %v539, 0.0
    %v796 = vmax.f32 %v540, 0.0
    %v797 = vmax.f32 %v541, 0.0
    %v798 = vmax.f32 %v542, 0.0
    %v799 = vmax.f32 %v543, 0.0
    %v800 = vmax.f32 %v544, 0.0
    %v801 = vmax.f32 %v545, 0.0
    %v802 = vmax.f32 %v546, 0.0
    %v803 = vmax.f32 %v547, 0.0
    %v804 = vmax.f32 %v548, 0.0
    %v805 = vmax.f32 %v549, 0.0
    %v806 = vmax.f32 %v550, 0.0
    %v807 = vmax.f32 %v551, 0.0
    %v808 = vmax.f32 %v552, 0.0
    %v809 = vmax.f32 %v553, 0.0
    %v810 = vmax.f32 %v554, 0.0
    %v811 = vmax.f32 %v555, 0.0
    %v812 = vmax.f32 %v556, 0.0
    %v813 = vmax.f32 %v557, 0.0
    %v814 = vmax.f32 %v558, 0.0
    %v815 = vmax.f32 %v559, 0.0
    %v816 = vmax.f32 %v560, 0.0
    %v817 = vmax.f32 %v561, 0.0
    %v818 = vmax.f32 %v562, 0.0
    %v819 = vmax.f32 %v563, 0.0
    %v820 = vmax.f32 %v564, 0.0
    %v821 = vmax.f32 %v565, 0.0
    %v822 = vmax.f32 %v566, 0.0
    %v823 = vmax.f32 %v567, 0.0
    %v824 = vmax.f32 %v568, 0.0
    %v825 = vmax.f32 %v569, 0.0
    %v826 = vmax.f32 %v570, 0.0
    %v827 = vmax.f32 %v571, 0.0
    %v828 = vmax.f32 %v572, 0.0
    %v829 = vmax.f32 %v573, 0.0
    %v830 = vmax.f32 %v574, 0.0
    %v831 = vmax.f32 %v575, 0.0
    %v832 = vmax.f32 %v576, 0.0
    %v833 = vmax.f32 %v577, 0.0
    %v834 = vmax.f32 %v578, 0.0
    %v835 = vmax.f32 %v579, 0.0
    %v836 = vmax.f32 %v580, 0.0
    %v837 = vmax.f32 %v581, 0.0
    %v838 = vmax.f32 %v582, 0.0
    %v839 = vmax.f32 %v583, 0.0
    %v840 = vmax.f32 %v584, 0.0
    %v841 = vmax.f32 %v585, 0.0
    %v842 = vmax.f32 %v586, 0.0
    %v843 = vmax.f32 %v587, 0.0
    %v844 = vmax.f32 %v588, 0.0
    %v845 = vmax.f32 %v589, 0.0
    %v846 = vmax.f32 %v590, 0.0
    %v847 = vmax.f32 %v591, 0.0
    %v848 = vmax.f32 %v592, 0.0
    %v849 = vmax.f32 %v593, 0.0
    %v850 = vmax.f32 %v594, 0.0
    %v851 = vmax.f32 %v595, 0.0
    %v852 = vmax.f32 %v596, 0.0
    %v853 = vmax.f32 %v597, 0.0
    %v854 = vmax.f32 %v598, 0.0
    %v855 = vmax.f32 %v599, 0.0
    %v856 = vmax.f32 %v600, 0.0
    %v857 = vmax.f32 %v601, 0.0
    %v858 = vmax.f32 %v602, 0.0
    %v859 = vmax.f32 %v603, 0.0
    %v860 = vmax.f32 %v604, 0.0
    %v861 = vmax.f32 %v605, 0.0
    %v862 = vmax.f32 %v606, 0.0
    %v863 = vmax.f32 %v607, 0.0
    %v864 = vmax.f32 %v608, 0.0
    %v865 = vmax.f32 %v609, 0.0
    %v866 = vmax.f32 %v610, 0.0
    %v867 = vmax.f32 %v611, 0.0
    %v868 = vmax.f32 %v612, 0.0
    %v869 = vmax.f32 %v613, 0.0
    %v870 = vmax.f32 %v614, 0.0
    %v871 = vmax.f32 %v615, 0.0
    %v872 = vmax.f32 %v616, 0.0
    %v873 = vmax.f32 %v617, 0.0
    %v874 = vmax.f32 %v618, 0.0
    %v875 = vmax.f32 %v619, 0.0
    %v876 = vmax.f32 %v620, 0.0
    %v877 = vmax.f32 %v621, 0.0
    %v878 = vmax.f32 %v622, 0.0
    %v879 = vmax.f32 %v623, 0.0
    %v880 = vmax.f32 %v624, 0.0
    %v881 = vmax.f32 %v625, 0.0
    %v882 = vmax.f32 %v626, 0.0
    %v883 = vmax.f32 %v627, 0.0
    %v884 = vmax.f32 %v628, 0.0
    %v885 = vmax.f32 %v629, 0.0
    %v886 = vmax.f32 %v630, 0.0
    %v887 = vmax.f32 %v631, 0.0
    %v888 = vmax.f32 %v632, 0.0
    %v889 = vmax.f32 %v633, 0.0
    %v890 = vmax.f32 %v634, 0.0
    %v891 = vmax.f32 %v635, 0.0
    %v892 = vmax.f32 %v636, 0.0
    %v893 = vmax.f32 %v637, 0.0
    %v894 = vmax.f32 %v638, 0.0
    %v895 = vmax.f32 %v639, 0.0
    %v896 = vmax.f32 %v640, 0.0
    %v897 = vmax.f32 %v641, 0.0
    %v898 = vmax.f32 %v642, 0.0
    %v899 = vmax.f32 %v643, 0.0
    %v900 = vmax.f32 %v644, 0.0
    %v901 = vmax.f32 %v645, 0.0
    %v902 = vmax.f32 %v646, 0.0
    %v903 = vmax.f32 %v647, 0.0
    %v904 = vmax.f32 %v648, 0.0
    %v905 = vmax.f32 %v649, 0.0
    %v906 = vmax.f32 %v650, 0.0
    %v907 = vmax.f32 %v651, 0.0
    %v908 = vmax.f32 %v652, 0.0
    %v909 = vmax.f32 %v653, 0.0
    %v910 = vmax.f32 %v654, 0.0
    %v911 = vmax.f32 %v655, 0.0
    %v912 = vmax.f32 %v656, 0.0
    %v913 = vmax.f32 %v657, 0.0
    %v914 = vmax.f32 %v658, 0.0
    %v915 = vmax.f32 %v659, 0.0
    %v916 = vmax.f32 %v660, 0.0
    %v917 = vmax.f32 %v661, 0.0
    %v918 = vmax.f32 %v662, 0.0
    %v919 = vmax.f32 %v663, 0.0
    %v920 = vmax.f32 %v664, 0.0
    %v921 = vmax.f32 %v665, 0.0
    %v922 = vmax.f32 %v666, 0.0
    %v923 = vmax.f32 %v667, 0.0
    %v924 = vmax.f32 %v668, 0.0
    %v925 = vmax.f32 %v669, 0.0
    %v926 = vmax.f32 %v670, 0.0
    %v927 = vmax.f32 %v671, 0.0
    %v928 = vmax.f32 %v672, 0.0
    %v929 = vmax.f32 %v673, 0.0
    %v930 = vmax.f32 %v674, 0.0
    %v931 = vmax.f32 %v675, 0.0
    %v932 = vmax.f32 %v676, 0.0
    %v933 = vmax.f32 %v677, 0.0
    %v934 = vmax.f32 %v678, 0.0
    %v935 = vmax.f32 %v679, 0.0
    %v936 = vmax.f32 %v680, 0.0
    %v937 = vmax.f32 %v681, 0.0
    %v938 = vmax.f32 %v682, 0.0
    %v939 = vmax.f32 %v683, 0.0
    %v940 = vmax.f32 %v684, 0.0
    %v941 = vmax.f32 %v685, 0.0
    %v942 = vmax.f32 %v686, 0.0
    %v943 = vmax.f32 %v687, 0.0
    %v944 = vmax.f32 %v688, 0.0
    %v945 = vmax.f32 %v689, 0.0
    %v946 = vmax.f32 %v690, 0.0
    %v947 = vmax.f32 %v691, 0.0
    %v948 = vmax.f32 %v692, 0.0
    %v949 = vmax.f32 %v693, 0.0
    %v950 = vmax.f32 %v694, 0.0
    %v951 = vmax.f32 %v695, 0.0
    %v952 = vmax.f32 %v696, 0.0
    %v953 = vmax.f32 %v697, 0.0
    %v954 = vmax.f32 %v698, 0.0
    %v955 = vmax.f32 %v699, 0.0
    %v956 = vmax.f32 %v700, 0.0
    %v957 = vmax.f32 %v701, 0.0
    %v958 = vmax.f32 %v702, 0.0
    %v959 = vmax.f32 %v703, 0.0
    %v960 = vmax.f32 %v704, 0.0
    %v961 = vmax.f32 %v705, 0.0
    %v962 = vmax.f32 %v706, 0.0
    %v963 = vmax.f32 %v707, 0.0
    %v964 = vmax.f32 %v708, 0.0
    %v965 = vmax.f32 %v709, 0.0
    %v966 = vmax.f32 %v710, 0.0
    %v967 = vmax.f32 %v711, 0.0
    %v968 = vmax.f32 %v712, 0.0
    %v969 = vmax.f32 %v713, 0.0
    %v970 = vmax.f32 %v714, 0.0
    %v971 = vmax.f32 %v715, 0.0
    %v972 = vmax.f32 %v716, 0.0
    %v973 = vmax.f32 %v717, 0.0
    %v974 = vmax.f32 %v718, 0.0
    %v975 = vmax.f32 %v719, 0.0
    %v976 = vmax.f32 %v720, 0.0
    %v977 = vmax.f32 %v721, 0.0
    %v978 = vmax.f32 %v722, 0.0
    %v979 = vmax.f32 %v723, 0.0
    %v980 = vmax.f32 %v724, 0.0
    %v981 = vmax.f32 %v725, 0.0
    %v982 = vmax.f32 %v726, 0.0
    %v983 = vmax.f32 %v727, 0.0
    %v984 = vmax.f32 %v728, 0.0
    %v985 = vmax.f32 %v729, 0.0
    %v986 = vmax.f32 %v730, 0.0
    %v987 = vmax.f32 %v731, 0.0
    %v988 = vmax.f32 %v732, 0.0
    %v989 = vmax.f32 %v733, 0.0
    %v990 = vmax.f32 %v734, 0.0
    %v991 = vmax.f32 %v735, 0.0
    %v992 = vmax.f32 %v736, 0.0
    %v993 = vmax.f32 %v737, 0.0
    %v994 = vmax.f32 %v738, 0.0
    %v995 = vmax.f32 %v739, 0.0
    %v996 = vmax.f32 %v740, 0.0
    %v997 = vmax.f32 %v741, 0.0
    %v998 = vmax.f32 %v742, 0.0
    %v999 = vmax.f32 %v743, 0.0
    %v1000 = vmax.f32 %v744, 0.0
    %v1001 = vmax.f32 %v745, 0.0
    %v1002 = vmax.f32 %v746, 0.0
    %v1003 = vmax.f32 %v747, 0.0
    %v1004 = vmax.f32 %v748, 0.0
    %v1005 = vmax.f32 %v749, 0.0
    %v1006 = vmax.f32 %v750, 0.0
    %v1007 = vmax.f32 %v751, 0.0
    %v1008 = vmax.f32 %v752, 0.0
    %v1009 = vmax.f32 %v753, 0.0
    %v1010 = vmax.f32 %v754, 0.0
    %v1011 = vmax.f32 %v755, 0.0
    %v1012 = vmax.f32 %v756, 0.0
    %v1013 = vmax.f32 %v757, 0.0
    %v1014 = vmax.f32 %v758, 0.0
    %v1015 = vmax.f32 %v759, 0.0
    %v1016 = vmax.f32 %v760, 0.0
    %v1017 = vmax.f32 %v761, 0.0
    %v1018 = vmax.f32 %v762, 0.0
    %v1019 = vmax.f32 %v763, 0.0
    %v1020 = vmax.f32 %v764, 0.0
    %v1021 = vmax.f32 %v765, 0.0
    %v1022 = vmax.f32 %v766, 0.0
    %v1023 = vmax.f32 %v767, 0.0
    %v1024 = vmax.f32 %v768, 0.0
    %v1025 = vmax.f32 %v769, 0.0
    %v1026 = vmax.f32 %v770, 0.0
    %v1027 = vmax.f32 %v771, 0.0
    %v1028 = vmax.f32 %v772, 0.0
    %v1029 = vmax.f32 %v773, 0.0
    %v1030 = vmax.f32 %v774, 0.0
    %v1031 = vmax.f32 %v775, 0.0
    %v1032 = vmax.f32 %v776, 0.0
    %v1033 = vmax.f32 %v777, 0.0
    %v1034 = vmax.f32 %v778, 0.0
    %v1035 = vmax.f32 %v779, 0.0
    %v1036 = vmax.f32 %v780, 0.0
    %v1037 = vmax.f32 %v781, 0.0
    %v1038 = vmax.f32 %v782, 0.0
    %v1039 = vmax.f32 %v783, 0.0
    %v1040 = vmax.f32 %v784, 0.0
    %v1041 = vmax.f32 %v785, 0.0
    %v1042 = vmax.f32 %v786, 0.0
    %v1043 = vmax.f32 %v787, 0.0
    %v1044 = vmax.f32 %v788, 0.0
    %v1045 = vmin.f32 %v789, 1.0
    %v1046 = vmin.f32 %v790, 1.0
    %v1047 = vmin.f32 %v791, 1.0
    %v1048 = vmin.f32 %v792, 1.0
    %v1049 = vmin.f32 %v793, 1.0
    %v1050 = vmin.f32 %v794, 1.0
    %v1051 = vmin.f32 %v795, 1.0
    %v1052 = vmin.f32 %v796, 1.0
    %v1053 = vmin.f32 %v797, 1.0
    %v1054 = vmin.f32 %v798, 1.0
    %v1055 = vmin.f32 %v799, 1.0
    %v1056 = vmin.f32 %v800, 1.0
    %v1057 = vmin.f32 %v801, 1.0
    %v1058 = vmin.f32 %v802, 1.0
    %v1059 = vmin.f32 %v803, 1.0
    %v1060 = vmin.f32 %v804, 1.0
    %v1061 = vmin.f32 %v805, 1.0
    %v1062 = vmin.f32 %v806, 1.0
    %v1063 = vmin.f32 %v807, 1.0
    %v1064 = vmin.f32 %v808, 1.0
    %v1065 = vmin.f32 %v809, 1.0
    %v1066 = vmin.f32 %v810, 1.0
    %v1067 = vmin.f32 %v811, 1.0
    %v1068 = vmin.f32 %v812, 1.0
    %v1069 = vmin.f32 %v813, 1.0
    %v1070 = vmin.f32 %v814, 1.0
    %v1071 = vmin.f32 %v815, 1.0
    %v1072 = vmin.f32 %v816, 1.0
    %v1073 = vmin.f32 %v817, 1.0
    %v1074 = vmin.f32 %v818, 1.0
    %v1075 = vmin.f32 %v819, 1.0
    %v1076 = vmin.f32 %v820, 1.0
    %v1077 = vmin.f32 %v821, 1.0
    %v1078 = vmin.f32 %v822, 1.0
    %v1079 = vmin.f32 %v823, 1.0
    %v1080 = vmin.f32 %v824, 1.0
    %v1081 = vmin.f32 %v825, 1.0
    %v1082 = vmin.f32 %v826, 1.0
    %v1083 = vmin.f32 %v827, 1.0
    %v1084 = vmin.f32 %v828, 1.0
    %v1085 = vmin.f32 %v829, 1.0
    %v1086 = vmin.f32 %v830, 1.0
    %v1087 = vmin.f32 %v831, 1.0
    %v1088 = vmin.f32 %v832, 1.0
    %v1089 = vmin.f32 %v833, 1.0
    %v1090 = vmin.f32 %v834, 1.0
    %v1091 = vmin.f32 %v835, 1.0
    %v1092 = vmin.f32 %v836, 1.0
    %v1093 = vmin.f32 %v837, 1.0
    %v1094 = vmin.f32 %v838, 1.0
    %v1095 = vmin.f32 %v839, 1.0
    %v1096 = vmin.f32 %v840, 1.0
    %v1097 = vmin.f32 %v841, 1.0
    %v1098 = vmin.f32 %v842, 1.0
    %v1099 = vmin.f32 %v843, 1.0
    %v1100 = vmin.f32 %v844, 1.0
    %v1101 = vmin.f32 %v845, 1.0
    %v1102 = vmin.f32 %v846, 1.0
    %v1103 = vmin.f32 %v847, 1.0
    %v1104 = vmin.f32 %v848, 1.0
    %v1105 = vmin.f32 %v849, 1.0
    %v1106 = vmin.f32 %v850, 1.0
    %v1107 = vmin.f32 %v851, 1.0
    %v1108 = vmin.f32 %v852, 1.0
    %v1109 = vmin.f32 %v853, 1.0
    %v1110 = vmin.f32 %v854, 1.0
    %v1111 = vmin.f32 %v855, 1.0
    %v1112 = vmin.f32 %v856, 1.0
    %v1113 = vmin.f32 %v857, 1.0
    %v1114 = vmin.f32 %v858, 1.0
    %v1115 = vmin.f32 %v859, 1.0
    %v1116 = vmin.f32 %v860, 1.0
    %v1117 = vmin.f32 %v861, 1.0
    %v1118 = vmin.f32 %v862, 1.0
    %v1119 = vmin.f32 %v863, 1.0
    %v1120 = vmin.f32 %v864, 1.0
    %v1121 = vmin.f32 %v865, 1.0
    %v1122 = vmin.f32 %v866, 1.0
    %v1123 = vmin.f32 %v867, 1.0
    %v1124 = vmin.f32 %v868, 1.0
    %v1125 = vmin.f32 %v869, 1.0
    %v1126 = vmin.f32 %v870, 1.0
    %v1127 = vmin.f32 %v871, 1.0
    %v1128 = vmin.f32 %v872, 1.0
    %v1129 = vmin.f32 %v873, 1.0
    %v1130 = vmin.f32 %v874, 1.0
    %v1131 = vmin.f32 %v875, 1.0
    %v1132 = vmin.f32 %v876, 1.0
    %v1133 = vmin.f32 %v877, 1.0
    %v1134 = vmin.f32 %v878, 1.0
    %v1135 = vmin.f32 %v879, 1.0
    %v1136 = vmin.f32 %v880, 1.0
    %v1137 = vmin.f32 %v881, 1.0
    %v1138 = vmin.f32 %v882, 1.0
    %v1139 = vmin.f32 %v883, 1.0
    %v1140 = vmin.f32 %v884, 1.0
    %v1141 = vmin.f32 %v885, 1.0
    %v1142 = vmin.f32 %v886, 1.0
    %v1143 = vmin.f32 %v887, 1.0
    %v1144 = vmin.f32 %v888, 1.0
    %v1145 = vmin.f32 %v889, 1.0
    %v1146 = vmin.f32 %v890, 1.0
    %v1147 = vmin.f32 %v891, 1.0
    %v1148 = vmin.f32 %v892, 1.0
    %v1149 = vmin.f32 %v893, 1.0
    %v1150 = vmin.f32 %v894, 1.0
    %v1151 = vmin.f32 %v895, 1.0
    %v1152 = vmin.f32 %v896, 1.0
    %v1153 = vmin.f32 %v897, 1.0
    %v1154 = vmin.f32 %v898, 1.0
    %v1155 = vmin.f32 %v899, 1.0
    %v1156 = vmin.f32 %v900, 1.0
    %v1157 = vmin.f32 %v901, 1.0
    %v1158 = vmin.f32 %v902, 1.0
    %v1159 = vmin.f32 %v903, 1.0
    %v1160 = vmin.f32 %v904, 1.0
    %v1161 = vmin.f32 %v905, 1.0
    %v1162 = vmin.f32 %v906, 1.0
    %v1163 = vmin.f32 %v907, 1.0
    %v1164 = vmin.f32 %v908, 1.0
    %v1165 = vmin.f32 %v909, 1.0
    %v1166 = vmin.f32 %v910, 1.0
    %v1167 = vmin.f32 %v911, 1.0
    %v1168 = vmin.f32 %v912, 1.0
    %v1169 = vmin.f32 %v913, 1.0
    %v1170 = vmin.f32 %v914, 1.0
    %v1171 = vmin.f32 %v915, 1.0
    %v1172 = vmin.f32 %v916, 1.0
    %v1173 = vmin.f32 %v917, 1.0
    %v1174 = vmin.f32 %v918, 1.0
    %v1175 = vmin.f32 %v919, 1.0
    %v1176 = vmin.f32 %v920, 1.0
    %v1177 = vmin.f32 %v921, 1.0
    %v1178 = vmin.f32 %v922, 1.0
    %v1179 = vmin.f32 %v923, 1.0
    %v1180 = vmin.f32 %v924, 1.0
    %v1181 = vmin.f32 %v925, 1.0
    %v1182 = vmin.f32 %v926, 1.0
    %v1183 = vmin.f32 %v927, 1.0
    %v1184 = vmin.f32 %v928, 1.0
    %v1185 = vmin.f32 %v929, 1.0
    %v1186 = vmin.f32 %v930, 1.0
    %v1187 = vmin.f32 %v931, 1.0
    %v1188 = vmin.f32 %v932, 1.0
    %v1189 = vmin.f32 %v933, 1.0
    %v1190 = vmin.f32 %v934, 1.0
    %v1191 = vmin.f32 %v935, 1.0
    %v1192 = vmin.f32 %v936, 1.0
    %v1193 = vmin.f32 %v937, 1.0
    %v1194 = vmin.f32 %v938, 1.0
    %v1195 = vmin.f32 %v939, 1.0
    %v1196 = vmin.f32 %v940, 1.0
    %v1197 = vmin.f32 %v941, 1.0
    %v1198 = vmin.f32 %v942, 1.0
    %v1199 = vmin.f32 %v943, 1.0
    %v1200 = vmin.f32 %v944, 1.0
    %v1201 = vmin.f32 %v945, 1.0
    %v1202 = vmin.f32 %v946, 1.0
    %v1203 = vmin.f32 %v947, 1.0
    %v1204 = vmin.f32 %v948, 1.0
    %v1205 = vmin.f32 %v949, 1.0
    %v1206 = vmin.f32 %v950, 1.0
    %v1207 = vmin.f32 %v951, 1.0
    %v1208 = vmin.f32 %v952, 1.0
    %v1209 = vmin.f32 %v953, 1.0
    %v1210 = vmin.f32 %v954, 1.0
    %v1211 = vmin.f32 %v955, 1.0
    %v1212 = vmin.f32 %v956, 1.0
    %v1213 = vmin.f32 %v957, 1.0
    %v1214 = vmin.f32 %v958, 1.0
    %v1215 = vmin.f32 %v959, 1.0
    %v1216 = vmin.f32 %v960, 1.0
    %v1217 = vmin.f32 %v961, 1.0
    %v1218 = vmin.f32 %v962, 1.0
    %v1219 = vmin.f32 %v963, 1.0
    %v1220 = vmin.f32 %v964, 1.0
    %v1221 = vmin.f32 %v965, 1.0
    %v1222 = vmin.f32 %v966, 1.0
    %v1223 = vmin.f32 %v967, 1.0
    %v1224 = vmin.f32 %v968, 1.0
    %v1225 = vmin.f32 %v969, 1.0
    %v1226 = vmin.f32 %v970, 1.0
    %v1227 = vmin.f32 %v971, 1.0
    %v1228 = vmin.f32 %v972, 1.0
    %v1229 = vmin.f32 %v973, 1.0
    %v1230 = vmin.f32 %v974, 1.0
    %v1231 = vmin.f32 %v975, 1.0
    %v1232 = vmin.f32 %v976, 1.0
    %v1233 = vmin.f32 %v977, 1.0
    %v1234 = vmin.f32 %v978, 1.0
    %v1235 = vmin.f32 %v979, 1.0
    %v1236 = vmin.f32 %v980, 1.0
    %v1237 = vmin.f32 %v981, 1.0
    %v1238 = vmin.f32 %v982, 1.0
    %v1239 = vmin.f32 %v983, 1.0
    %v1240 = vmin.f32 %v984, 1.0
    %v1241 = vmin.f32 %v985, 1.0
    %v1242 = vmin.f32 %v986, 1.0
    %v1243 = vmin.f32 %v987, 1.0
    %v1244 = vmin.f32 %v988, 1.0
    %v1245 = vmin.f32 %v989, 1.0
    %v1246 = vmin.f32 %v990, 1.0
    %v1247 = vmin.f32 %v991, 1.0
    %v1248 = vmin.f32 %v992, 1.0
    %v1249 = vmin.f32 %v993, 1.0
    %v1250 = vmin.f32 %v994, 1.0
    %v1251 = vmin.f32 %v995, 1.0
    %v1252 = vmin.f32 %v996, 1.0
    %v1253 = vmin.f32 %v997, 1.0
    %v1254 = vmin.f32 %v998, 1.0
    %v1255 = vmin.f32 %v999, 1.0
    %v1256 = vmin.f32 %v1000, 1.0
    %v1257 = vmin.f32 %v1001, 1.0
    %v1258 = vmin.f32 %v1002, 1.0
    %v1259 = vmin.f32 %v1003, 1.0
    %v1260 = vmin.f32 %v1004, 1.0
    %v1261 = vmin.f32 %v1005, 1.0
    %v1262 = vmin.f32 %v1006, 1.0
    %v1263 = vmin.f32 %v1007, 1.0
    %v1264 = vmin.f32 %v1008, 1.0
    %v1265 = vmin.f32 %v1009, 1.0
    %v1266 = vmin.f32 %v1010, 1.0
    %v1267 = vmin.f32 %v1011, 1.0
    %v1268 = vmin.f32 %v1012, 1.0
    %v1269 = vmin.f32 %v1013, 1.0
    %v1270 = vmin.f32 %v1014, 1.0
    %v1271 = vmin.f32 %v1015, 1.0
    %v1272 = vmin.f32 %v1016, 1.0
    %v1273 = vmin.f32 %v1017, 1.0
    %v1274 = vmin.f32 %v1018, 1.0
    %v1275 = vmin.f32 %v1019, 1.0
    %v1276 = vmin.f32 %v1020, 1.0
    %v1277 = vmin.f32 %v1021, 1.0
    %v1278 = vmin.f32 %v1022, 1.0
    %v1279 = vmin.f32 %v1023, 1.0
    %v1280 = vmin.f32 %v1024, 1.0
    %v1281 = vmin.f32 %v1025, 1.0
    %v1282 = vmin.f32 %v1026, 1.0
    %v1283 = vmin.f32 %v1027, 1.0
    %v1284 = vmin.f32 %v1028, 1.0
    %v1285 = vmin.f32 %v1029, 1.0
    %v1286 = vmin.f32 %v1030, 1.0
    %v1287 = vmin.f32 %v1031, 1.0
    %v1288 = vmin.f32 %v1032, 1.0
    %v1289 = vmin.f32 %v1033, 1.0
    %v1290 = vmin.f32 %v1034, 1.0
    %v1291 = vmin.f32 %v1035, 1.0
    %v1292 = vmin.f32 %v1036, 1.0
    %v1293 = vmin.f32 %v1037, 1.0
    %v1294 = vmin.f32 %v1038, 1.0
    %v1295 = vmin.f32 %v1039, 1.0
    %v1296 = vmin.f32 %v1040, 1.0
    %v1297 = vmin.f32 %v1041, 1.0
    %v1298 = vmin.f32 %v1042, 1.0
    %v1299 = vmin.f32 %v1043, 1.0
    %v1300 = vmin.f32 %v1044, 1.0
    %1301 = vst [vmem:[#allocation5] sm:$0xff] %v1045
    %1302 = vst [vmem:[#allocation5 + $0x8] sm:$0xff] %v1046
    %1303 = vst [vmem:[#allocation5 + $0x10] sm:$0xff] %v1047
    %1304 = vst [vmem:[#allocation5 + $0x18] sm:$0xff] %v1048
    %1305 = vst [vmem:[#allocation5 + $0x20] sm:$0xff] %v1049
    %1306 = vst [vmem:[#allocation5 + $0x28] sm:$0xff] %v1050
    %1307 = vst [vmem:[#allocation5 + $0x30] sm:$0xff] %v1051
    %1308 = vst [vmem:[#allocation5 + $0x38] sm:$0xff] %v1052
    %1309 = vst [vmem:[#allocation5 + $0x40] sm:$0xff] %v1053
    %1310 = vst [vmem:[#allocation5 + $0x48] sm:$0xff] %v1054
    %1311 = vst [vmem:[#allocation5 + $0x50] sm:$0xff] %v1055
    %1312 = vst [vmem:[#allocation5 + $0x58] sm:$0xff] %v1056
    %1313 = vst [vmem:[#allocation5 + $0x60] sm:$0xff] %v1057
    %1314 = vst [vmem:[#allocation5 + $0x68] sm:$0xff] %v1058
    %1315 = vst [vmem:[#allocation5 + $0x70] sm:$0xff] %v1059
    %1316 = vst [vmem:[#allocation5 + $0x78] sm:$0xff] %v1060
    %1317 = vst [vmem:[#allocation5 + $0x80] sm:$0xff] %v1061
    %1318 = vst [vmem:[#allocation5 + $0x88] sm:$0xff] %v1062
    %1319 = vst [vmem:[#allocation5 + $0x90] sm:$0xff] %v1063
    %1320 = vst [vmem:[#allocation5 + $0x98] sm:$0xff] %v1064
    %1321 = vst [vmem:[#allocation5 + $0xa0] sm:$0xff] %v1065
    %1322 = vst [vmem:[#allocation5 + $0xa8] sm:$0xff] %v1066
    %1323 = vst [vmem:[#allocation5 + $0xb0] sm:$0xff] %v1067
    %1324 = vst [vmem:[#allocation5 + $0xb8] sm:$0xff] %v1068
    %1325 = vst [vmem:[#allocation5 + $0xc0] sm:$0xff] %v1069
    %1326 = vst [vmem:[#allocation5 + $0xc8] sm:$0xff] %v1070
    %1327 = vst [vmem:[#allocation5 + $0xd0] sm:$0xff] %v1071
    %1328 = vst [vmem:[#allocation5 + $0xd8] sm:$0xff] %v1072
    %1329 = vst [vmem:[#allocation5 + $0xe0] sm:$0xff] %v1073
    %1330 = vst [vmem:[#allocation5 + $0xe8] sm:$0xff] %v1074
    %1331 = vst [vmem:[#allocation5 + $0xf0] sm:$0xff] %v1075
    %1332 = vst [vmem:[#allocation5 + $0xf8] sm:$0xff] %v1076
    %1333 = vst [vmem:[#allocation5 + $0x100] sm:$0xff] %v1077
    %1334 = vst [vmem:[#allocation5 + $0x108] sm:$0xff] %v1078
    %1335 = vst [vmem:[#allocation5 + $0x110] sm:$0xff] %v1079
    %1336 = vst [vmem:[#allocation5 + $0x118] sm:$0xff] %v1080
    %1337 = vst [vmem:[#allocation5 + $0x120] sm:$0xff] %v1081
    %1338 = vst [vmem:[#allocation5 + $0x128] sm:$0xff] %v1082
    %1339 = vst [vmem:[#allocation5 + $0x130] sm:$0xff] %v1083
    %1340 = vst [vmem:[#allocation5 + $0x138] sm:$0xff] %v1084
    %1341 = vst [vmem:[#allocation5 + $0x140] sm:$0xff] %v1085
    %1342 = vst [vmem:[#allocation5 + $0x148] sm:$0xff] %v1086
    %1343 = vst [vmem:[#allocation5 + $0x150] sm:$0xff] %v1087
    %1344 = vst [vmem:[#allocation5 + $0x158] sm:$0xff] %v1088
    %1345 = vst [vmem:[#allocation5 + $0x160] sm:$0xff] %v1089
    %1346 = vst [vmem:[#allocation5 + $0x168] sm:$0xff] %v1090
    %1347 = vst [vmem:[#allocation5 + $0x170] sm:$0xff] %v1091
    %1348 = vst [vmem:[#allocation5 + $0x178] sm:$0xff] %v1092
    %1349 = vst [vmem:[#allocation5 + $0x180] sm:$0xff] %v1093
    %1350 = vst [vmem:[#allocation5 + $0x188] sm:$0xff] %v1094
    %1351 = vst [vmem:[#allocation5 + $0x190] sm:$0xff] %v1095
    %1352 = vst [vmem:[#allocation5 + $0x198] sm:$0xff] %v1096
    %1353 = vst [vmem:[#allocation5 + $0x1a0] sm:$0xff] %v1097
    %1354 = vst [vmem:[#allocation5 + $0x1a8] sm:$0xff] %v1098
    %1355 = vst [vmem:[#allocation5 + $0x1b0] sm:$0xff] %v1099
    %1356 = vst [vmem:[#allocation5 + $0x1b8] sm:$0xff] %v1100
    %1357 = vst [vmem:[#allocation5 + $0x1c0] sm:$0xff] %v1101
    %1358 = vst [vmem:[#allocation5 + $0x1c8] sm:$0xff] %v1102
    %1359 = vst [vmem:[#allocation5 + $0x1d0] sm:$0xff] %v1103
    %1360 = vst [vmem:[#allocation5 + $0x1d8] sm:$0xff] %v1104
    %1361 = vst [vmem:[#allocation5 + $0x1e0] sm:$0xff] %v1105
    %1362 = vst [vmem:[#allocation5 + $0x1e8] sm:$0xff] %v1106
    %1363 = vst [vmem:[#allocation5 + $0x1f0] sm:$0xff] %v1107
    %1364 = vst [vmem:[#allocation5 + $0x1f8] sm:$0xff] %v1108
    %1365 = vst [vmem:[#allocation5 + $0x200] sm:$0xff] %v1109
    %1366 = vst [vmem:[#allocation5 + $0x208] sm:$0xff] %v1110
    %1367 = vst [vmem:[#allocation5 + $0x210] sm:$0xff] %v1111
    %1368 = vst [vmem:[#allocation5 + $0x218] sm:$0xff] %v1112
    %1369 = vst [vmem:[#allocation5 + $0x220] sm:$0xff] %v1113
    %1370 = vst [vmem:[#allocation5 + $0x228] sm:$0xff] %v1114
    %1371 = vst [vmem:[#allocation5 + $0x230] sm:$0xff] %v1115
    %1372 = vst [vmem:[#allocation5 + $0x238] sm:$0xff] %v1116
    %1373 = vst [vmem:[#allocation5 + $0x240] sm:$0xff] %v1117
    %1374 = vst [vmem:[#allocation5 + $0x248] sm:$0xff] %v1118
    %1375 = vst [vmem:[#allocation5 + $0x250] sm:$0xff] %v1119
    %1376 = vst [vmem:[#allocation5 + $0x258] sm:$0xff] %v1120
    %1377 = vst [vmem:[#allocation5 + $0x260] sm:$0xff] %v1121
    %1378 = vst [vmem:[#allocation5 + $0x268] sm:$0xff] %v1122
    %1379 = vst [vmem:[#allocation5 + $0x270] sm:$0xff] %v1123
    %1380 = vst [vmem:[#allocation5 + $0x278] sm:$0xff] %v1124
    %1381 = vst [vmem:[#allocation5 + $0x280] sm:$0xff] %v1125
    %1382 = vst [vmem:[#allocation5 + $0x288] sm:$0xff] %v1126
    %1383 = vst [vmem:[#allocation5 + $0x290] sm:$0xff] %v1127
    %1384 = vst [vmem:[#allocation5 + $0x298] sm:$0xff] %v1128
    %1385 = vst [vmem:[#allocation5 + $0x2a0] sm:$0xff] %v1129
    %1386 = vst [vmem:[#allocation5 + $0x2a8] sm:$0xff] %v1130
    %1387 = vst [vmem:[#allocation5 + $0x2b0] sm:$0xff] %v1131
    %1388 = vst [vmem:[#allocation5 + $0x2b8] sm:$0xff] %v1132
    %1389 = vst [vmem:[#allocation5 + $0x2c0] sm:$0xff] %v1133
    %1390 = vst [vmem:[#allocation5 + $0x2c8] sm:$0xff] %v1134
    %1391 = vst [vmem:[#allocation5 + $0x2d0] sm:$0xff] %v1135
    %1392 = vst [vmem:[#allocation5 + $0x2d8] sm:$0xff] %v1136
    %1393 = vst [vmem:[#allocation5 + $0x2e0] sm:$0xff] %v1137
    %1394 = vst [vmem:[#allocation5 + $0x2e8] sm:$0xff] %v1138
    %1395 = vst [vmem:[#allocation5 + $0x2f0] sm:$0xff] %v1139
    %1396 = vst [vmem:[#allocation5 + $0x2f8] sm:$0xff] %v1140
    %1397 = vst [vmem:[#allocation5 + $0x300] sm:$0xff] %v1141
    %1398 = vst [vmem:[#allocation5 + $0x308] sm:$0xff] %v1142
    %1399 = vst [vmem:[#allocation5 + $0x310] sm:$0xff] %v1143
    %1400 = vst [vmem:[#allocation5 + $0x318] sm:$0xff] %v1144
    %1401 = vst [vmem:[#allocation5 + $0x320] sm:$0xff] %v1145
    %1402 = vst [vmem:[#allocation5 + $0x328] sm:$0xff] %v1146
    %1403 = vst [vmem:[#allocation5 + $0x330] sm:$0xff] %v1147
    %1404 = vst [vmem:[#allocation5 + $0x338] sm:$0xff] %v1148
    %1405 = vst [vmem:[#allocation5 + $0x340] sm:$0xff] %v1149
    %1406 = vst [vmem:[#allocation5 + $0x348] sm:$0xff] %v1150
    %1407 = vst [vmem:[#allocation5 + $0x350] sm:$0xff] %v1151
    %1408 = vst [vmem:[#allocation5 + $0x358] sm:$0xff] %v1152
    %1409 = vst [vmem:[#allocation5 + $0x360] sm:$0xff] %v1153
    %1410 = vst [vmem:[#allocation5 + $0x368] sm:$0xff] %v1154
    %1411 = vst [vmem:[#allocation5 + $0x370] sm:$0xff] %v1155
    %1412 = vst [vmem:[#allocation5 + $0x378] sm:$0xff] %v1156
    %1413 = vst [vmem:[#allocation5 + $0x380] sm:$0xff] %v1157
    %1414 = vst [vmem:[#allocation5 + $0x388] sm:$0xff] %v1158
    %1415 = vst [vmem:[#allocation5 + $0x390] sm:$0xff] %v1159
    %1416 = vst [vmem:[#allocation5 + $0x398] sm:$0xff] %v1160
    %1417 = vst [vmem:[#allocation5 + $0x3a0] sm:$0xff] %v1161
    %1418 = vst [vmem:[#allocation5 + $0x3a8] sm:$0xff] %v1162
    %1419 = vst [vmem:[#allocation5 + $0x3b0] sm:$0xff] %v1163
    %1420 = vst [vmem:[#allocation5 + $0x3b8] sm:$0xff] %v1164
    %1421 = vst [vmem:[#allocation5 + $0x3c0] sm:$0xff] %v1165
    %1422 = vst [vmem:[#allocation5 + $0x3c8] sm:$0xff] %v1166
    %1423 = vst [vmem:[#allocation5 + $0x3d0] sm:$0xff] %v1167
    %1424 = vst [vmem:[#allocation5 + $0x3d8] sm:$0xff] %v1168
    %1425 = vst [vmem:[#allocation5 + $0x3e0] sm:$0xff] %v1169
    %1426 = vst [vmem:[#allocation5 + $0x3e8] sm:$0xff] %v1170
    %1427 = vst [vmem:[#allocation5 + $0x3f0] sm:$0xff] %v1171
    %1428 = vst [vmem:[#allocation5 + $0x3f8] sm:$0xff] %v1172
    %1429 = vst [vmem:[#allocation5 + $0x400] sm:$0xff] %v1173
    %1430 = vst [vmem:[#allocation5 + $0x408] sm:$0xff] %v1174
    %1431 = vst [vmem:[#allocation5 + $0x410] sm:$0xff] %v1175
    %1432 = vst [vmem:[#allocation5 + $0x418] sm:$0xff] %v1176
    %1433 = vst [vmem:[#allocation5 + $0x420] sm:$0xff] %v1177
    %1434 = vst [vmem:[#allocation5 + $0x428] sm:$0xff] %v1178
    %1435 = vst [vmem:[#allocation5 + $0x430] sm:$0xff] %v1179
    %1436 = vst [vmem:[#allocation5 + $0x438] sm:$0xff] %v1180
    %1437 = vst [vmem:[#allocation5 + $0x440] sm:$0xff] %v1181
    %1438 = vst [vmem:[#allocation5 + $0x448] sm:$0xff] %v1182
    %1439 = vst [vmem:[#allocation5 + $0x450] sm:$0xff] %v1183
    %1440 = vst [vmem:[#allocation5 + $0x458] sm:$0xff] %v1184
    %1441 = vst [vmem:[#allocation5 + $0x460] sm:$0xff] %v1185
    %1442 = vst [vmem:[#allocation5 + $0x468] sm:$0xff] %v1186
    %1443 = vst [vmem:[#allocation5 + $0x470] sm:$0xff] %v1187
    %1444 = vst [vmem:[#allocation5 + $0x478] sm:$0xff] %v1188
    %1445 = vst [vmem:[#allocation5 + $0x480] sm:$0xff] %v1189
    %1446 = vst [vmem:[#allocation5 + $0x488] sm:$0xff] %v1190
    %1447 = vst [vmem:[#allocation5 + $0x490] sm:$0xff] %v1191
    %1448 = vst [vmem:[#allocation5 + $0x498] sm:$0xff] %v1192
    %1449 = vst [vmem:[#allocation5 + $0x4a0] sm:$0xff] %v1193
    %1450 = vst [vmem:[#allocation5 + $0x4a8] sm:$0xff] %v1194
    %1451 = vst [vmem:[#allocation5 + $0x4b0] sm:$0xff] %v1195
    %1452 = vst [vmem:[#allocation5 + $0x4b8] sm:$0xff] %v1196
    %1453 = vst [vmem:[#allocation5 + $0x4c0] sm:$0xff] %v1197
    %1454 = vst [vmem:[#allocation5 + $0x4c8] sm:$0xff] %v1198
    %1455 = vst [vmem:[#allocation5 + $0x4d0] sm:$0xff] %v1199
    %1456 = vst [vmem:[#allocation5 + $0x4d8] sm:$0xff] %v1200
    %1457 = vst [vmem:[#allocation5 + $0x4e0] sm:$0xff] %v1201
    %1458 = vst [vmem:[#allocation5 + $0x4e8] sm:$0xff] %v1202
    %1459 = vst [vmem:[#allocation5 + $0x4f0] sm:$0xff] %v1203
    %1460 = vst [vmem:[#allocation5 + $0x4f8] sm:$0xff] %v1204
    %1461 = vst [vmem:[#allocation5 + $0x500] sm:$0xff] %v1205
    %1462 = vst [vmem:[#allocation5 + $0x508] sm:$0xff] %v1206
    %1463 = vst [vmem:[#allocation5 + $0x510] sm:$0xff] %v1207
    %1464 = vst [vmem:[#allocation5 + $0x518] sm:$0xff] %v1208
    %1465 = vst [vmem:[#allocation5 + $0x520] sm:$0xff] %v1209
    %1466 = vst [vmem:[#allocation5 + $0x528] sm:$0xff] %v1210
    %1467 = vst [vmem:[#allocation5 + $0x530] sm:$0xff] %v1211
    %1468 = vst [vmem:[#allocation5 + $0x538] sm:$0xff] %v1212
    %1469 = vst [vmem:[#allocation5 + $0x540] sm:$0xff] %v1213
    %1470 = vst [vmem:[#allocation5 + $0x548] sm:$0xff] %v1214
    %1471 = vst [vmem:[#allocation5 + $0x550] sm:$0xff] %v1215
    %1472 = vst [vmem:[#allocation5 + $0x558] sm:$0xff] %v1216
    %1473 = vst [vmem:[#allocation5 + $0x560] sm:$0xff] %v1217
    %1474 = vst [vmem:[#allocation5 + $0x568] sm:$0xff] %v1218
    %1475 = vst [vmem:[#allocation5 + $0x570] sm:$0xff] %v1219
    %1476 = vst [vmem:[#allocation5 + $0x578] sm:$0xff] %v1220
    %1477 = vst [vmem:[#allocation5 + $0x580] sm:$0xff] %v1221
    %1478 = vst [vmem:[#allocation5 + $0x588] sm:$0xff] %v1222
    %1479 = vst [vmem:[#allocation5 + $0x590] sm:$0xff] %v1223
    %1480 = vst [vmem:[#allocation5 + $0x598] sm:$0xff] %v1224
    %1481 = vst [vmem:[#allocation5 + $0x5a0] sm:$0xff] %v1225
    %1482 = vst [vmem:[#allocation5 + $0x5a8] sm:$0xff] %v1226
    %1483 = vst [vmem:[#allocation5 + $0x5b0] sm:$0xff] %v1227
    %1484 = vst [vmem:[#allocation5 + $0x5b8] sm:$0xff] %v1228
    %1485 = vst [vmem:[#allocation5 + $0x5c0] sm:$0xff] %v1229
    %1486 = vst [vmem:[#allocation5 + $0x5c8] sm:$0xff] %v1230
    %1487 = vst [vmem:[#allocation5 + $0x5d0] sm:$0xff] %v1231
    %1488 = vst [vmem:[#allocation5 + $0x5d8] sm:$0xff] %v1232
    %1489 = vst [vmem:[#allocation5 + $0x5e0] sm:$0xff] %v1233
    %1490 = vst [vmem:[#allocation5 + $0x5e8] sm:$0xff] %v1234
    %1491 = vst [vmem:[#allocation5 + $0x5f0] sm:$0xff] %v1235
    %1492 = vst [vmem:[#allocation5 + $0x5f8] sm:$0xff] %v1236
    %1493 = vst [vmem:[#allocation5 + $0x600] sm:$0xff] %v1237
    %1494 = vst [vmem:[#allocation5 + $0x608] sm:$0xff] %v1238
    %1495 = vst [vmem:[#allocation5 + $0x610] sm:$0xff] %v1239
    %1496 = vst [vmem:[#allocation5 + $0x618] sm:$0xff] %v1240
    %1497 = vst [vmem:[#allocation5 + $0x620] sm:$0xff] %v1241
    %1498 = vst [vmem:[#allocation5 + $0x628] sm:$0xff] %v1242
    %1499 = vst [vmem:[#allocation5 + $0x630] sm:$0xff] %v1243
    %1500 = vst [vmem:[#allocation5 + $0x638] sm:$0xff] %v1244
    %1501 = vst [vmem:[#allocation5 + $0x640] sm:$0xff] %v1245
    %1502 = vst [vmem:[#allocation5 + $0x648] sm:$0xff] %v1246
    %1503 = vst [vmem:[#allocation5 + $0x650] sm:$0xff] %v1247
    %1504 = vst [vmem:[#allocation5 + $0x658] sm:$0xff] %v1248
    %1505 = vst [vmem:[#allocation5 + $0x660] sm:$0xff] %v1249
    %1506 = vst [vmem:[#allocation5 + $0x668] sm:$0xff] %v1250
    %1507 = vst [vmem:[#allocation5 + $0x670] sm:$0xff] %v1251
    %1508 = vst [vmem:[#allocation5 + $0x678] sm:$0xff] %v1252
    %1509 = vst [vmem:[#allocation5 + $0x680] sm:$0xff] %v1253
    %1510 = vst [vmem:[#allocation5 + $0x688] sm:$0xff] %v1254
    %1511 = vst [vmem:[#allocation5 + $0x690] sm:$0xff] %v1255
    %1512 = vst [vmem:[#allocation5 + $0x698] sm:$0xff] %v1256
    %1513 = vst [vmem:[#allocation5 + $0x6a0] sm:$0xff] %v1257
    %1514 = vst [vmem:[#allocation5 + $0x6a8] sm:$0xff] %v1258
    %1515 = vst [vmem:[#allocation5 + $0x6b0] sm:$0xff] %v1259
    %1516 = vst [vmem:[#allocation5 + $0x6b8] sm:$0xff] %v1260
    %1517 = vst [vmem:[#allocation5 + $0x6c0] sm:$0xff] %v1261
    %1518 = vst [vmem:[#allocation5 + $0x6c8] sm:$0xff] %v1262
    %1519 = vst [vmem:[#allocation5 + $0x6d0] sm:$0xff] %v1263
    %1520 = vst [vmem:[#allocation5 + $0x6d8] sm:$0xff] %v1264
    %1521 = vst [vmem:[#allocation5 + $0x6e0] sm:$0xff] %v1265
    %1522 = vst [vmem:[#allocation5 + $0x6e8] sm:$0xff] %v1266
    %1523 = vst [vmem:[#allocation5 + $0x6f0] sm:$0xff] %v1267
    %1524 = vst [vmem:[#allocation5 + $0x6f8] sm:$0xff] %v1268
    %1525 = vst [vmem:[#allocation5 + $0x700] sm:$0xff] %v1269
    %1526 = vst [vmem:[#allocation5 + $0x708] sm:$0xff] %v1270
    %1527 = vst [vmem:[#allocation5 + $0x710] sm:$0xff] %v1271
    %1528 = vst [vmem:[#allocation5 + $0x718] sm:$0xff] %v1272
    %1529 = vst [vmem:[#allocation5 + $0x720] sm:$0xff] %v1273
    %1530 = vst [vmem:[#allocation5 + $0x728] sm:$0xff] %v1274
    %1531 = vst [vmem:[#allocation5 + $0x730] sm:$0xff] %v1275
    %1532 = vst [vmem:[#allocation5 + $0x738] sm:$0xff] %v1276
    %1533 = vst [vmem:[#allocation5 + $0x740] sm:$0xff] %v1277
    %1534 = vst [vmem:[#allocation5 + $0x748] sm:$0xff] %v1278
    %1535 = vst [vmem:[#allocation5 + $0x750] sm:$0xff] %v1279
    %1536 = vst [vmem:[#allocation5 + $0x758] sm:$0xff] %v1280
    %1537 = vst [vmem:[#allocation5 + $0x760] sm:$0xff] %v1281
    %1538 = vst [vmem:[#allocation5 + $0x768] sm:$0xff] %v1282
    %1539 = vst [vmem:[#allocation5 + $0x770] sm:$0xff] %v1283
    %1540 = vst [vmem:[#allocation5 + $0x778] sm:$0xff] %v1284
    %1541 = vst [vmem:[#allocation5 + $0x780] sm:$0xff] %v1285
    %1542 = vst [vmem:[#allocation5 + $0x788] sm:$0xff] %v1286
    %1543 = vst [vmem:[#allocation5 + $0x790] sm:$0xff] %v1287
    %1544 = vst [vmem:[#allocation5 + $0x798] sm:$0xff] %v1288
    %1545 = vst [vmem:[#allocation5 + $0x7a0] sm:$0xff] %v1289
    %1546 = vst [vmem:[#allocation5 + $0x7a8] sm:$0xff] %v1290
    %1547 = vst [vmem:[#allocation5 + $0x7b0] sm:$0xff] %v1291
    %1548 = vst [vmem:[#allocation5 + $0x7b8] sm:$0xff] %v1292
    %1549 = vst [vmem:[#allocation5 + $0x7c0] sm:$0xff] %v1293
    %1550 = vst [vmem:[#allocation5 + $0x7c8] sm:$0xff] %v1294
    %1551 = vst [vmem:[#allocation5 + $0x7d0] sm:$0xff] %v1295
    %1552 = vst [vmem:[#allocation5 + $0x7d8] sm:$0xff] %v1296
    %1553 = vst [vmem:[#allocation5 + $0x7e0] sm:$0xff] %v1297
    %1554 = vst [vmem:[#allocation5 + $0x7e8] sm:$0xff] %v1298
    %1555 = vst [vmem:[#allocation5 + $0x7f0] sm:$0xff] %v1299
    %1556 = vst [vmem:[#allocation5 + $0x7f8] sm:$0xff] %v1300
    // Predicated region
    $region10: #{tpu_custom_call.1} parent=1 // pred_check
      _
    $region11: #{tpu_custom_call.1} parent=1 // pred_check_branch
      %1558 = sbr.rel (0) target = $region13
    $region12: #{tpu_custom_call.1} parent=1 // pred_region
      %s1560 = ssub.s32 32768, 32768
      %1561 = vsyncadd [#allocation4], %s1560
      %s1563 = sshll.u32 [#allocation5], 4
      %s1564 = int_to_ptr.vmem [resolvable:$true] %s1563
      %1566 = dma.vmem_to_hbm [thread:$0]  %s1564, 32768, %s1, [#allocation4]
    $region13: #{tpu_custom_call.1} parent=1 // pred_fallthru
      _
    // Predicated region
    $region14: #{tpu_custom_call.1} parent=1 // pred_check
      _
    $region15: #{tpu_custom_call.1} parent=1 // pred_check_branch
      %1568 = sbr.rel (0) target = $region17
    $region16: #{tpu_custom_call.1} parent=1 // pred_region
      %1569 = dma.done [#allocation4], 32768
    $region17: #{tpu_custom_call.1} parent=1 // pred_fallthru
      _
    %1570 = vsyncpa [#allocation3], 1
    %1571 = vsyncpa [#allocation4], 1

</llo_original>
